<compile_context>
chip_gen: v7x
topology: tpu7x:2x2x1
jax: 0.10.0
libtpu: 0.0.40
codegen_flags: <defaults>
</compile_context>

<pallas_src>
import functools

import jax
import jax.numpy as jnp
from jax import lax
from jax.experimental import pallas as pl
from jax.experimental.pallas import tpu as pltpu


# ----------------------------------------------------------------------------
# Pallas kernel: the whole forward pass runs in VMEM in one invocation.
# Time-varying activations use 2D (T*Bp, .) layout so per-step access is an
# 8-aligned dynamic sublane slice.
# ----------------------------------------------------------------------------
def convrnn_kernel(
    x_ref,                      # (T*Bp, 2*Din) bf16, row block s = [x_s | x_{T-1-s}]
    wih_ref,                    # (2*Din, 6H)   bf16, gate-interleaved block weights
    bih_ref,                    # (1, 6H)       f32, r/z hidden biases folded in
    whh_ref,                    # (2H, 6H)      bf16, block-diag, gate-interleaved
    bhhn_ref,                   # (1, 2H)       f32, n-gate hidden bias only
    wc_ref, bc_ref,             # (2H, F) bf16, (1, F) f32
    w1_ref, b1_ref,             # (2H+F, FC) bf16, (1, FC) f32
    w2_ref, b2_ref,             # (FC, L) bf16, (1, L) f32
    out_ref,                    # (Bp, L) f32
    gi_ref,                     # scratch (T*Bp, 6H) f32: precomputed input gates
    seq_ref,                    # scratch (T*Bp, 2H) f32: time-aligned [h_f | h_b]
    *, T, Bp, H,
):
    H2 = 2 * H
    H4 = 4 * H

    # ---- input projection (both directions, both time orders): ONE matmul --
    # gi row block s = [r_f(x_s) r_b(x_{T-1-s}) | z_f z_b | n_f n_b] (+ biases)
    gi_ref[...] = (
        jnp.dot(x_ref[...], wih_ref[...], preferred_element_type=jnp.float32)
        + bih_ref[...]
    )

    # Hoisted loop invariants (loaded / broadcast once, not per iteration).
    whh = whh_ref[...]                                    # bf16 (2H, 6H)
    bhh_n = jnp.broadcast_to(bhhn_ref[...], (Bp, H2))     # f32  (Bp, 2H)

    # ---- merged fwd/bwd recurrence: one loop of length T --------------------
    def step(s, h):                                       # h = [h_f | h_b], f32
        off = pl.multiple_of(s * Bp, Bp)
        gi = gi_ref[pl.ds(off, Bp), :]                    # single slice load
        # Fused block-diagonal hidden-to-hidden projection: one MXU issue,
        # bf16 operands, f32 accumulation.
        gh = jnp.dot(h.astype(jnp.bfloat16), whh,
                     preferred_element_type=jnp.float32)
        # Each gate computed once across the full 2H lane width.
        r = jax.nn.sigmoid(gi[:, 0:H2] + gh[:, 0:H2])
        z = jax.nn.sigmoid(gi[:, H2:H4] + gh[:, H2:H4])
        n = jnp.tanh(gi[:, H4:] + r * (gh[:, H4:] + bhh_n))
        h_new = n + z * (h - n)                           # == (1-z)*n + z*h
        # Time-aligned sequence storage into final column positions
        # (off the carried dependency chain).
        seq_ref[pl.ds(off, Bp), 0:H] = h_new[:, 0:H]              # fwd @ t=s
        off_b = pl.multiple_of((T - 1 - s) * Bp, Bp)
        seq_ref[pl.ds(off_b, Bp), H:H2] = h_new[:, H:H2]          # bwd @ t=T-1-s
        return h_new

    h_cat = lax.fori_loop(
        0, T, step, jnp.zeros((Bp, H2), jnp.float32), unroll=True
    )                                                      # [h_fwd | h_bwd]

    # ---- conv (1, 2H) + ReLU == one (T*Bp, 2H) @ (2H, F) matmul -------------
    conv = jnp.maximum(
        jnp.dot(seq_ref[...].astype(jnp.bfloat16), wc_ref[...],
                preferred_element_type=jnp.float32) + bc_ref[...],
        0.0,
    )                                                      # (T*Bp, F)

    # ---- max-pool over time: static 8-aligned row blocks, VPU max tree ------
    pooled = conv[0:Bp, :]
    for t in range(1, T):
        pooled = jnp.maximum(pooled, conv[t * Bp:(t + 1) * Bp, :])

    # ---- concat([h_fwd | h_bwd | pooled]) -> fc1 -> ReLU -> fc2 -------------
    feat_in = jnp.concatenate([h_cat, pooled], axis=-1)    # (Bp, 2H + F)
    feat = jnp.maximum(
        jnp.dot(feat_in.astype(jnp.bfloat16), w1_ref[...],
                preferred_element_type=jnp.float32) + b1_ref[...],
        0.0,
    )
    out_ref[...] = (
        jnp.dot(feat.astype(jnp.bfloat16), w2_ref[...],
                preferred_element_type=jnp.float32) + b2_ref[...]
    )                                                      # padded rows dropped host-side


# ----------------------------------------------------------------------------
# Wrapper (glue): layout plumbing + weight fusion/permutation + pallas_call
# ----------------------------------------------------------------------------
def conv_rnn_forward(x, p):
    B, T, Din = x.shape
    H = p["w_hh_f"].shape[0]
    L = p["fc2_w"].shape[1]
    Bp = ((B + 7) // 8) * 8                  # pad batch to sublane multiple

    # time-major, pad batch; per-step paired input [x_s | x_{T-1-s}]
    x_tb = jnp.transpose(x, (1, 0, 2)).astype(jnp.float32)       # (T, B, Din)
    x_tb = jnp.pad(x_tb, ((0, 0), (0, Bp - B), (0, 0)))          # (T, Bp, Din)
    x_pair = jnp.concatenate([x_tb, x_tb[::-1]], axis=-1)        # (T, Bp, 2Din)
    x2d = x_pair.reshape(T * Bp, 2 * Din).astype(jnp.bfloat16)

    r2 = lambda b: b.reshape(1, -1).astype(jnp.float32)

    def interleave(a_f, a_b):
        # (..., 3H) x2 -> (..., 6H) per-gate interleave [r_f r_b|z_f z_b|n_f n_b]
        parts = []
        for g in range(3):
            parts += [a_f[..., g * H:(g + 1) * H], a_b[..., g * H:(g + 1) * H]]
        return jnp.concatenate(parts, axis=-1)

    # Input weights as a (2*Din, 6H) block matrix: rows 0:Din carry the fwd
    # weights (fwd gate columns), rows Din:2Din the bwd weights (bwd columns).
    zf = jnp.zeros_like(p["w_ih_f"])
    zb = jnp.zeros_like(p["w_ih_b"])
    wih_pair = jnp.concatenate(
        [interleave(p["w_ih_f"], zb), interleave(zf, p["w_ih_b"])], axis=0
    ).astype(jnp.bfloat16)                                       # (2Din, 6H)

    # Biases: fold the r/z hidden biases into the precomputed input bias;
    # the n-gate hidden bias must stay inside r*(W_hn h + b_hn).
    bih_i = interleave(p["b_ih_f"], p["b_ih_b"])                 # (6H,)
    bhh_i = interleave(p["b_hh_f"], p["b_hh_b"])                 # (6H,)
    bih_fused = (bih_i.at[: 4 * H].add(bhh_i[: 4 * H])).reshape(1, -1)
    bhh_n = bhh_i[4 * H:].reshape(1, -1)                         # (1, 2H)

    # Block-diagonal, gate-interleaved hidden weights: rows = [h_fwd | h_bwd]
    whh_blk = jnp.zeros((2 * H, 6 * H), jnp.float32)
    for g in range(3):
        whh_blk = whh_blk.at[:H, (2 * g) * H:(2 * g + 1) * H].set(
            p["w_hh_f"][:, g * H:(g + 1) * H])
        whh_blk = whh_blk.at[H:, (2 * g + 1) * H:(2 * g + 2) * H].set(
            p["w_hh_b"][:, g * H:(g + 1) * H])
    whh_blk = whh_blk.astype(jnp.bfloat16)

    # conv_w assumed pre-reshaped to (2H, F) (PyTorch Conv2d(1,F,(1,2H)) weight
    # needs a (F,1,1,2H) -> (2H,F) transpose when loading real checkpoints).
    args = (
        x2d,
        wih_pair, bih_fused.astype(jnp.float32), whh_blk, bhh_n.astype(jnp.float32),
        p["conv_w"].astype(jnp.bfloat16), r2(p["conv_b"]),
        p["fc1_w"].astype(jnp.bfloat16), r2(p["fc1_b"]),
        p["fc2_w"].astype(jnp.bfloat16), r2(p["fc2_b"]),
    )

    kernel = functools.partial(convrnn_kernel, T=T, Bp=Bp, H=H)
    vmem = pl.BlockSpec(memory_space=pltpu.MemorySpace.VMEM)
    out = pl.pallas_call(
        kernel,
        out_shape=jax.ShapeDtypeStruct((Bp, L), jnp.float32),
        in_specs=[vmem] * len(args),
        out_specs=vmem,
        scratch_shapes=[
            pltpu.VMEM((T * Bp, 6 * H), jnp.float32),   # precomputed gi
            pltpu.VMEM((T * Bp, 2 * H), jnp.float32),   # time-aligned [h_f|h_b]
        ],
        compiler_params=pltpu.CompilerParams(
            vmem_limit_bytes=32 * 1024 * 1024),
    )(*args)
    return out[:B]                               # drop batch padding host-side


# ----------------------------------------------------------------------------
# Pure-JAX reference (correctness check against the kernel), all f32
# ----------------------------------------------------------------------------
def _gru_cell_ref(x_t, h, wih, whh, bih, bhh, H):
    gi = x_t @ wih + bih
    gh = h @ whh + bhh
    r = jax.nn.sigmoid(gi[:, :H] + gh[:, :H])
    z = jax.nn.sigmoid(gi[:, H:2 * H] + gh[:, H:2 * H])
    n = jnp.tanh(gi[:, 2 * H:] + r * gh[:, 2 * H:])
    return (1.0 - z) * n + z * h


def conv_rnn_reference(x, p):
    B, T, _ = x.shape
    H = p["w_hh_f"].shape[0]

    h = jnp.zeros((B, H), jnp.float32)
    seq_f = []
    for t in range(T):
        h = _gru_cell_ref(x[:, t], h, p["w_ih_f"], p["w_hh_f"],
                          p["b_ih_f"], p["b_hh_f"], H)
        seq_f.append(h)
    h_fwd = h

    h = jnp.zeros((B, H), jnp.float32)
    seq_b = [None] * T
    for t in range(T - 1, -1, -1):
        h = _gru_cell_ref(x[:, t], h, p["w_ih_b"], p["w_hh_b"],
                          p["b_ih_b"], p["b_hh_b"], H)
        seq_b[t] = h
    h_bwd = h

    rnn_seq = jnp.concatenate(
        [jnp.stack(seq_f, axis=1), jnp.stack(seq_b, axis=1)], axis=-1)  # (B,T,2H)
    conv = jnp.maximum(rnn_seq @ p["conv_w"] + p["conv_b"], 0.0)        # (B,T,F)
    pooled = jnp.max(conv, axis=1)                                      # (B,F)
    feat = jnp.concatenate([h_fwd, h_bwd, pooled], axis=1)
    feat = jnp.maximum(feat @ p["fc1_w"] + p["fc1_b"], 0.0)
    return feat @ p["fc2_w"] + p["fc2_b"]


# ----------------------------------------------------------------------------
# Deterministic parameter init (shapes follow ConvRNNModel.__init__)
# ----------------------------------------------------------------------------
def init_params(key, *, din=40, hidden=32, n_fmaps=16, fc_size=32, n_labels=4):
    ks = jax.random.split(key, 20)
    u = lambda k, shape, s: jax.random.uniform(k, shape, jnp.float32, -s, s)
    sh = 1.0 / jnp.sqrt(hidden)
    sc = 1.0 / jnp.sqrt(2 * hidden)
    s1 = 1.0 / jnp.sqrt(n_fmaps + 2 * hidden)
    s2 = 1.0 / jnp.sqrt(fc_size)
    return dict(
        # GRU weights stored pre-transposed: (in, 3H), gate order [r, z, n]
        w_ih_f=u(ks[0], (din, 3 * hidden), sh),
        w_hh_f=u(ks[1], (hidden, 3 * hidden), sh),
        b_ih_f=u(ks[2], (3 * hidden,), sh),
        b_hh_f=u(ks[3], (3 * hidden,), sh),
        w_ih_b=u(ks[4], (din, 3 * hidden), sh),
        w_hh_b=u(ks[5], (hidden, 3 * hidden), sh),
        b_ih_b=u(ks[6], (3 * hidden,), sh),
        b_hh_b=u(ks[7], (3 * hidden,), sh),
        # Conv2d(1, F, (1, 2H)) == matmul with (2H, F)
        conv_w=u(ks[8], (2 * hidden, n_fmaps), sc),
        conv_b=u(ks[9], (n_fmaps,), sc),
        # fc1: (2H + F, fc_size), input column order [h_fwd | h_bwd | pooled]
        fc1_w=u(ks[10], (2 * hidden + n_fmaps, fc_size), s1),
        fc1_b=u(ks[11], (fc_size,), s1),
        fc2_w=u(ks[12], (fc_size, n_labels), s2),
        fc2_b=u(ks[13], (n_labels,), s2),
    )


if __name__ == "__main__":
    B, T, DIN = 2, 8, 40
    H, F, FC, L = 32, 16, 32, 4

    key = jax.random.PRNGKey(0)
    kx, kp = jax.random.split(key)
    x = jax.random.normal(kx, (B, T, DIN), dtype=jnp.float32)
    params = init_params(kp, din=DIN, hidden=H, n_fmaps=F, fc_size=FC, n_labels=L)

    out = conv_rnn_forward(x, params)
    out = jax.block_until_ready(out)

    ref = jax.block_until_ready(conv_rnn_reference(x, params))
    assert out.shape == (B, L), out.shape
    # bf16 MXU operands (f32 accumulation / gate math) -> slightly looser
    # tolerance than a pure-f32 kernel.
    if not jnp.allclose(out, ref, atol=1e-2, rtol=1e-2):
        raise AssertionError(
            f"kernel/reference mismatch, max abs err={jnp.max(jnp.abs(out - ref))}")

    print("KERNEL_OK")
</pallas_src>

<mosaic_0001>
module attributes {stable_mosaic.version = 11 : i64} {
  func.func @convrnn_kernel(%arg0: memref<64x80xbf16, #tpu.memory_space<vmem>>, %arg1: memref<80x192xbf16, #tpu.memory_space<vmem>>, %arg2: memref<1x192xf32, #tpu.memory_space<vmem>>, %arg3: memref<64x192xbf16, #tpu.memory_space<vmem>>, %arg4: memref<1x64xf32, #tpu.memory_space<vmem>>, %arg5: memref<64x16xbf16, #tpu.memory_space<vmem>>, %arg6: memref<1x16xf32, #tpu.memory_space<vmem>>, %arg7: memref<80x32xbf16, #tpu.memory_space<vmem>>, %arg8: memref<1x32xf32, #tpu.memory_space<vmem>>, %arg9: memref<32x4xbf16, #tpu.memory_space<vmem>>, %arg10: memref<1x4xf32, #tpu.memory_space<vmem>>, %arg11: memref<8x4xf32, #tpu.memory_space<vmem>>, %arg12: memref<64x192xf32, #tpu.memory_space<vmem>>, %arg13: memref<64x64xf32, #tpu.memory_space<vmem>>) attributes {dimension_semantics = [], scalar_prefetch = 0 : i64, scratch_operands = 2 : i64, tpu.core_type = #tpu.core_type<tc>} {
    %c0 = arith.constant 0 : index
    %c0_0 = arith.constant 0 : index
    %0 = vector.load %arg0[%c0, %c0_0] : memref<64x80xbf16, #tpu.memory_space<vmem>>, vector<64x80xbf16>
    %c0_1 = arith.constant 0 : index
    %c0_2 = arith.constant 0 : index
    %1 = vector.load %arg1[%c0_1, %c0_2] : memref<80x192xbf16, #tpu.memory_space<vmem>>, vector<80x192xbf16>
    %cst = arith.constant dense<0.000000e+00> : vector<64x192xf32>
    %2 = tpu.matmul %0, %1, %cst {dimension_numbers = #tpu.dot_dimension_numbers<[1], [0], [0], [1], [0, 0, 1, 1], [], []>} : vector<64x80xbf16>, vector<80x192xbf16>, vector<64x192xf32> -> vector<64x192xf32>
    %c0_3 = arith.constant 0 : index
    %c0_4 = arith.constant 0 : index
    %3 = vector.load %arg2[%c0_3, %c0_4] : memref<1x192xf32, #tpu.memory_space<vmem>>, vector<1x192xf32>
    %4 = vector.broadcast %3 : vector<1x192xf32> to vector<64x192xf32>
    %5 = arith.addf %2, %4 : vector<64x192xf32>
    %c0_5 = arith.constant 0 : index
    %c0_6 = arith.constant 0 : index
    %6 = vector.load %arg12[%c0_5, %c0_6] : memref<64x192xf32, #tpu.memory_space<vmem>>, vector<64x192xf32>
    tpu.vector_store %arg12[%c0_5, %c0_6], %5 {strides = array<i32>} : memref<64x192xf32, #tpu.memory_space<vmem>>, vector<64x192xf32>,
    %c0_7 = arith.constant 0 : index
    %c0_8 = arith.constant 0 : index
    %7 = vector.load %arg3[%c0_7, %c0_8] : memref<64x192xbf16, #tpu.memory_space<vmem>>, vector<64x192xbf16>
    %c0_9 = arith.constant 0 : index
    %c0_10 = arith.constant 0 : index
    %8 = vector.load %arg4[%c0_9, %c0_10] : memref<1x64xf32, #tpu.memory_space<vmem>>, vector<1x64xf32>
    %9 = vector.shape_cast %8 : vector<1x64xf32> to vector<1x64xf32>
    %10 = vector.broadcast %9 : vector<1x64xf32> to vector<8x64xf32>
    %cst_11 = arith.constant 0.000000e+00 : f32
    %11 = vector.broadcast %cst_11 : f32 to vector<8x64xf32>
    %c0_i32 = arith.constant 0 : i32
    %c8_i32 = arith.constant 8 : i32
    %12 = arith.muli %c0_i32, %c8_i32 : i32
    %13 = tpu.assume_multiple %12, 8 : i32
    %14 = arith.index_cast %13 : i32 to index
    %c0_12 = arith.constant 0 : index
    %15 = vector.load %arg12[%14, %c0_12] : memref<64x192xf32, #tpu.memory_space<vmem>>, vector<8x192xf32>
    %16 = arith.truncf %11 : vector<8x64xf32> to vector<8x64xbf16>
    %cst_13 = arith.constant dense<0.000000e+00> : vector<8x192xf32>
    %17 = tpu.matmul %16, %7, %cst_13 {dimension_numbers = #tpu.dot_dimension_numbers<[1], [0], [0], [1], [0, 0, 1, 1], [], []>} : vector<8x64xbf16>, vector<64x192xbf16>, vector<8x192xf32> -> vector<8x192xf32>
    %18 = vector.extract_strided_slice %15 {offsets = [0, 0], sizes = [8, 64], strides = [1, 1]} : vector<8x192xf32> to vector<8x64xf32>
    %19 = vector.extract_strided_slice %17 {offsets = [0, 0], sizes = [8, 64], strides = [1, 1]} : vector<8x192xf32> to vector<8x64xf32>
    %20 = arith.addf %18, %19 : vector<8x64xf32>
    %21 = arith.negf %20 : vector<8x64xf32>
    %22 = math.exp %21 : vector<8x64xf32>
    %cst_14 = arith.constant 1.000000e+00 : f32
    %23 = vector.broadcast %cst_14 : f32 to vector<8x64xf32>
    %24 = arith.addf %23, %22 : vector<8x64xf32>
    %25 = arith.divf %23, %24 : vector<8x64xf32>
    %26 = vector.extract_strided_slice %15 {offsets = [0, 64], sizes = [8, 64], strides = [1, 1]} : vector<8x192xf32> to vector<8x64xf32>
    %27 = vector.extract_strided_slice %17 {offsets = [0, 64], sizes = [8, 64], strides = [1, 1]} : vector<8x192xf32> to vector<8x64xf32>
    %28 = arith.addf %26, %27 : vector<8x64xf32>
    %29 = arith.negf %28 : vector<8x64xf32>
    %30 = math.exp %29 : vector<8x64xf32>
    %cst_15 = arith.constant 1.000000e+00 : f32
    %31 = vector.broadcast %cst_15 : f32 to vector<8x64xf32>
    %32 = arith.addf %31, %30 : vector<8x64xf32>
    %33 = arith.divf %31, %32 : vector<8x64xf32>
    %34 = vector.extract_strided_slice %15 {offsets = [0, 128], sizes = [8, 64], strides = [1, 1]} : vector<8x192xf32> to vector<8x64xf32>
    %35 = vector.extract_strided_slice %17 {offsets = [0, 128], sizes = [8, 64], strides = [1, 1]} : vector<8x192xf32> to vector<8x64xf32>
    %36 = arith.addf %35, %10 : vector<8x64xf32>
    %37 = arith.mulf %25, %36 : vector<8x64xf32>
    %38 = arith.addf %34, %37 : vector<8x64xf32>
    %39 = math.tanh %38 : vector<8x64xf32>
    %40 = arith.subf %11, %39 : vector<8x64xf32>
    %41 = arith.mulf %33, %40 : vector<8x64xf32>
    %42 = arith.addf %39, %41 : vector<8x64xf32>
    %43 = vector.extract_strided_slice %42 {offsets = [0, 0], sizes = [8, 32], strides = [1, 1]} : vector<8x64xf32> to vector<8x32xf32>
    %44 = arith.index_cast %13 : i32 to index
    %c0_16 = arith.constant 0 : index
    %45 = vector.load %arg13[%44, %c0_16] : memref<64x64xf32, #tpu.memory_space<vmem>>, vector<8x32xf32>
    tpu.vector_store %arg13[%44, %c0_16], %43 {strides = array<i32>} : memref<64x64xf32, #tpu.memory_space<vmem>>, vector<8x32xf32>,
    %c7_i32 = arith.constant 7 : i32
    %46 = arith.subi %c7_i32, %c0_i32 : i32
    %c8_i32_17 = arith.constant 8 : i32
    %47 = arith.muli %46, %c8_i32_17 : i32
    %48 = tpu.assume_multiple %47, 8 : i32
    %49 = vector.extract_strided_slice %42 {offsets = [0, 32], sizes = [8, 32], strides = [1, 1]} : vector<8x64xf32> to vector<8x32xf32>
    %50 = arith.index_cast %48 : i32 to index
    %c32 = arith.constant 32 : index
    %51 = vector.load %arg13[%50, %c32] : memref<64x64xf32, #tpu.memory_space<vmem>>, vector<8x32xf32>
    tpu.vector_store %arg13[%50, %c32], %49 {strides = array<i32>} : memref<64x64xf32, #tpu.memory_space<vmem>>, vector<8x32xf32>,
    %c1_i32 = arith.constant 1 : i32
    %c8_i32_18 = arith.constant 8 : i32
    %52 = arith.muli %c1_i32, %c8_i32_18 : i32
    %53 = tpu.assume_multiple %52, 8 : i32
    %54 = arith.index_cast %53 : i32 to index
    %c0_19 = arith.constant 0 : index
    %55 = vector.load %arg12[%54, %c0_19] : memref<64x192xf32, #tpu.memory_space<vmem>>, vector<8x192xf32>
    %56 = arith.truncf %42 : vector<8x64xf32> to vector<8x64xbf16>
    %cst_20 = arith.constant dense<0.000000e+00> : vector<8x192xf32>
    %57 = tpu.matmul %56, %7, %cst_20 {dimension_numbers = #tpu.dot_dimension_numbers<[1], [0], [0], [1], [0, 0, 1, 1], [], []>} : vector<8x64xbf16>, vector<64x192xbf16>, vector<8x192xf32> -> vector<8x192xf32>
    %58 = vector.extract_strided_slice %55 {offsets = [0, 0], sizes = [8, 64], strides = [1, 1]} : vector<8x192xf32> to vector<8x64xf32>
    %59 = vector.extract_strided_slice %57 {offsets = [0, 0], sizes = [8, 64], strides = [1, 1]} : vector<8x192xf32> to vector<8x64xf32>
    %60 = arith.addf %58, %59 : vector<8x64xf32>
    %61 = arith.negf %60 : vector<8x64xf32>
    %62 = math.exp %61 : vector<8x64xf32>
    %cst_21 = arith.constant 1.000000e+00 : f32
    %63 = vector.broadcast %cst_21 : f32 to vector<8x64xf32>
    %64 = arith.addf %63, %62 : vector<8x64xf32>
    %65 = arith.divf %63, %64 : vector<8x64xf32>
    %66 = vector.extract_strided_slice %55 {offsets = [0, 64], sizes = [8, 64], strides = [1, 1]} : vector<8x192xf32> to vector<8x64xf32>
    %67 = vector.extract_strided_slice %57 {offsets = [0, 64], sizes = [8, 64], strides = [1, 1]} : vector<8x192xf32> to vector<8x64xf32>
    %68 = arith.addf %66, %67 : vector<8x64xf32>
    %69 = arith.negf %68 : vector<8x64xf32>
    %70 = math.exp %69 : vector<8x64xf32>
    %cst_22 = arith.constant 1.000000e+00 : f32
    %71 = vector.broadcast %cst_22 : f32 to vector<8x64xf32>
    %72 = arith.addf %71, %70 : vector<8x64xf32>
    %73 = arith.divf %71, %72 : vector<8x64xf32>
    %74 = vector.extract_strided_slice %55 {offsets = [0, 128], sizes = [8, 64], strides = [1, 1]} : vector<8x192xf32> to vector<8x64xf32>
    %75 = vector.extract_strided_slice %57 {offsets = [0, 128], sizes = [8, 64], strides = [1, 1]} : vector<8x192xf32> to vector<8x64xf32>
    %76 = arith.addf %75, %10 : vector<8x64xf32>
    %77 = arith.mulf %65, %76 : vector<8x64xf32>
    %78 = arith.addf %74, %77 : vector<8x64xf32>
    %79 = math.tanh %78 : vector<8x64xf32>
    %80 = arith.subf %42, %79 : vector<8x64xf32>
    %81 = arith.mulf %73, %80 : vector<8x64xf32>
    %82 = arith.addf %79, %81 : vector<8x64xf32>
    %83 = vector.extract_strided_slice %82 {offsets = [0, 0], sizes = [8, 32], strides = [1, 1]} : vector<8x64xf32> to vector<8x32xf32>
    %84 = arith.index_cast %53 : i32 to index
    %c0_23 = arith.constant 0 : index
    %85 = vector.load %arg13[%84, %c0_23] : memref<64x64xf32, #tpu.memory_space<vmem>>, vector<8x32xf32>
    tpu.vector_store %arg13[%84, %c0_23], %83 {strides = array<i32>} : memref<64x64xf32, #tpu.memory_space<vmem>>, vector<8x32xf32>,
    %c7_i32_24 = arith.constant 7 : i32
    %86 = arith.subi %c7_i32_24, %c1_i32 : i32
    %c8_i32_25 = arith.constant 8 : i32
    %87 = arith.muli %86, %c8_i32_25 : i32
    %88 = tpu.assume_multiple %87, 8 : i32
    %89 = vector.extract_strided_slice %82 {offsets = [0, 32], sizes = [8, 32], strides = [1, 1]} : vector<8x64xf32> to vector<8x32xf32>
    %90 = arith.index_cast %88 : i32 to index
    %c32_26 = arith.constant 32 : index
    %91 = vector.load %arg13[%90, %c32_26] : memref<64x64xf32, #tpu.memory_space<vmem>>, vector<8x32xf32>
    tpu.vector_store %arg13[%90, %c32_26], %89 {strides = array<i32>} : memref<64x64xf32, #tpu.memory_space<vmem>>, vector<8x32xf32>,
    %c2_i32 = arith.constant 2 : i32
    %c8_i32_27 = arith.constant 8 : i32
    %92 = arith.muli %c2_i32, %c8_i32_27 : i32
    %93 = tpu.assume_multiple %92, 8 : i32
    %94 = arith.index_cast %93 : i32 to index
    %c0_28 = arith.constant 0 : index
    %95 = vector.load %arg12[%94, %c0_28] : memref<64x192xf32, #tpu.memory_space<vmem>>, vector<8x192xf32>
    %96 = arith.truncf %82 : vector<8x64xf32> to vector<8x64xbf16>
    %cst_29 = arith.constant dense<0.000000e+00> : vector<8x192xf32>
    %97 = tpu.matmul %96, %7, %cst_29 {dimension_numbers = #tpu.dot_dimension_numbers<[1], [0], [0], [1], [0, 0, 1, 1], [], []>} : vector<8x64xbf16>, vector<64x192xbf16>, vector<8x192xf32> -> vector<8x192xf32>
    %98 = vector.extract_strided_slice %95 {offsets = [0, 0], sizes = [8, 64], strides = [1, 1]} : vector<8x192xf32> to vector<8x64xf32>
    %99 = vector.extract_strided_slice %97 {offsets = [0, 0], sizes = [8, 64], strides = [1, 1]} : vector<8x192xf32> to vector<8x64xf32>
    %100 = arith.addf %98, %99 : vector<8x64xf32>
    %101 = arith.negf %100 : vector<8x64xf32>
    %102 = math.exp %101 : vector<8x64xf32>
    %cst_30 = arith.constant 1.000000e+00 : f32
    %103 = vector.broadcast %cst_30 : f32 to vector<8x64xf32>
    %104 = arith.addf %103, %102 : vector<8x64xf32>
    %105 = arith.divf %103, %104 : vector<8x64xf32>
    %106 = vector.extract_strided_slice %95 {offsets = [0, 64], sizes = [8, 64], strides = [1, 1]} : vector<8x192xf32> to vector<8x64xf32>
    %107 = vector.extract_strided_slice %97 {offsets = [0, 64], sizes = [8, 64], strides = [1, 1]} : vector<8x192xf32> to vector<8x64xf32>
    %108 = arith.addf %106, %107 : vector<8x64xf32>
    %109 = arith.negf %108 : vector<8x64xf32>
    %110 = math.exp %109 : vector<8x64xf32>
    %cst_31 = arith.constant 1.000000e+00 : f32
    %111 = vector.broadcast %cst_31 : f32 to vector<8x64xf32>
    %112 = arith.addf %111, %110 : vector<8x64xf32>
    %113 = arith.divf %111, %112 : vector<8x64xf32>
    %114 = vector.extract_strided_slice %95 {offsets = [0, 128], sizes = [8, 64], strides = [1, 1]} : vector<8x192xf32> to vector<8x64xf32>
    %115 = vector.extract_strided_slice %97 {offsets = [0, 128], sizes = [8, 64], strides = [1, 1]} : vector<8x192xf32> to vector<8x64xf32>
    %116 = arith.addf %115, %10 : vector<8x64xf32>
    %117 = arith.mulf %105, %116 : vector<8x64xf32>
    %118 = arith.addf %114, %117 : vector<8x64xf32>
    %119 = math.tanh %118 : vector<8x64xf32>
    %120 = arith.subf %82, %119 : vector<8x64xf32>
    %121 = arith.mulf %113, %120 : vector<8x64xf32>
    %122 = arith.addf %119, %121 : vector<8x64xf32>
    %123 = vector.extract_strided_slice %122 {offsets = [0, 0], sizes = [8, 32], strides = [1, 1]} : vector<8x64xf32> to vector<8x32xf32>
    %124 = arith.index_cast %93 : i32 to index
    %c0_32 = arith.constant 0 : index
    %125 = vector.load %arg13[%124, %c0_32] : memref<64x64xf32, #tpu.memory_space<vmem>>, vector<8x32xf32>
    tpu.vector_store %arg13[%124, %c0_32], %123 {strides = array<i32>} : memref<64x64xf32, #tpu.memory_space<vmem>>, vector<8x32xf32>,
    %c7_i32_33 = arith.constant 7 : i32
    %126 = arith.subi %c7_i32_33, %c2_i32 : i32
    %c8_i32_34 = arith.constant 8 : i32
    %127 = arith.muli %126, %c8_i32_34 : i32
    %128 = tpu.assume_multiple %127, 8 : i32
    %129 = vector.extract_strided_slice %122 {offsets = [0, 32], sizes = [8, 32], strides = [1, 1]} : vector<8x64xf32> to vector<8x32xf32>
    %130 = arith.index_cast %128 : i32 to index
    %c32_35 = arith.constant 32 : index
    %131 = vector.load %arg13[%130, %c32_35] : memref<64x64xf32, #tpu.memory_space<vmem>>, vector<8x32xf32>
    tpu.vector_store %arg13[%130, %c32_35], %129 {strides = array<i32>} : memref<64x64xf32, #tpu.memory_space<vmem>>, vector<8x32xf32>,
    %c3_i32 = arith.constant 3 : i32
    %c8_i32_36 = arith.constant 8 : i32
    %132 = arith.muli %c3_i32, %c8_i32_36 : i32
    %133 = tpu.assume_multiple %132, 8 : i32
    %134 = arith.index_cast %133 : i32 to index
    %c0_37 = arith.constant 0 : index
    %135 = vector.load %arg12[%134, %c0_37] : memref<64x192xf32, #tpu.memory_space<vmem>>, vector<8x192xf32>
    %136 = arith.truncf %122 : vector<8x64xf32> to vector<8x64xbf16>
    %cst_38 = arith.constant dense<0.000000e+00> : vector<8x192xf32>
    %137 = tpu.matmul %136, %7, %cst_38 {dimension_numbers = #tpu.dot_dimension_numbers<[1], [0], [0], [1], [0, 0, 1, 1], [], []>} : vector<8x64xbf16>, vector<64x192xbf16>, vector<8x192xf32> -> vector<8x192xf32>
    %138 = vector.extract_strided_slice %135 {offsets = [0, 0], sizes = [8, 64], strides = [1, 1]} : vector<8x192xf32> to vector<8x64xf32>
    %139 = vector.extract_strided_slice %137 {offsets = [0, 0], sizes = [8, 64], strides = [1, 1]} : vector<8x192xf32> to vector<8x64xf32>
    %140 = arith.addf %138, %139 : vector<8x64xf32>
    %141 = arith.negf %140 : vector<8x64xf32>
    %142 = math.exp %141 : vector<8x64xf32>
    %cst_39 = arith.constant 1.000000e+00 : f32
    %143 = vector.broadcast %cst_39 : f32 to vector<8x64xf32>
    %144 = arith.addf %143, %142 : vector<8x64xf32>
    %145 = arith.divf %143, %144 : vector<8x64xf32>
    %146 = vector.extract_strided_slice %135 {offsets = [0, 64], sizes = [8, 64], strides = [1, 1]} : vector<8x192xf32> to vector<8x64xf32>
    %147 = vector.extract_strided_slice %137 {offsets = [0, 64], sizes = [8, 64], strides = [1, 1]} : vector<8x192xf32> to vector<8x64xf32>
    %148 = arith.addf %146, %147 : vector<8x64xf32>
    %149 = arith.negf %148 : vector<8x64xf32>
    %150 = math.exp %149 : vector<8x64xf32>
    %cst_40 = arith.constant 1.000000e+00 : f32
    %151 = vector.broadcast %cst_40 : f32 to vector<8x64xf32>
    %152 = arith.addf %151, %150 : vector<8x64xf32>
    %153 = arith.divf %151, %152 : vector<8x64xf32>
    %154 = vector.extract_strided_slice %135 {offsets = [0, 128], sizes = [8, 64], strides = [1, 1]} : vector<8x192xf32> to vector<8x64xf32>
    %155 = vector.extract_strided_slice %137 {offsets = [0, 128], sizes = [8, 64], strides = [1, 1]} : vector<8x192xf32> to vector<8x64xf32>
    %156 = arith.addf %155, %10 : vector<8x64xf32>
    %157 = arith.mulf %145, %156 : vector<8x64xf32>
    %158 = arith.addf %154, %157 : vector<8x64xf32>
    %159 = math.tanh %158 : vector<8x64xf32>
    %160 = arith.subf %122, %159 : vector<8x64xf32>
    %161 = arith.mulf %153, %160 : vector<8x64xf32>
    %162 = arith.addf %159, %161 : vector<8x64xf32>
    %163 = vector.extract_strided_slice %162 {offsets = [0, 0], sizes = [8, 32], strides = [1, 1]} : vector<8x64xf32> to vector<8x32xf32>
    %164 = arith.index_cast %133 : i32 to index
    %c0_41 = arith.constant 0 : index
    %165 = vector.load %arg13[%164, %c0_41] : memref<64x64xf32, #tpu.memory_space<vmem>>, vector<8x32xf32>
    tpu.vector_store %arg13[%164, %c0_41], %163 {strides = array<i32>} : memref<64x64xf32, #tpu.memory_space<vmem>>, vector<8x32xf32>,
    %c7_i32_42 = arith.constant 7 : i32
    %166 = arith.subi %c7_i32_42, %c3_i32 : i32
    %c8_i32_43 = arith.constant 8 : i32
    %167 = arith.muli %166, %c8_i32_43 : i32
    %168 = tpu.assume_multiple %167, 8 : i32
    %169 = vector.extract_strided_slice %162 {offsets = [0, 32], sizes = [8, 32], strides = [1, 1]} : vector<8x64xf32> to vector<8x32xf32>
    %170 = arith.index_cast %168 : i32 to index
    %c32_44 = arith.constant 32 : index
    %171 = vector.load %arg13[%170, %c32_44] : memref<64x64xf32, #tpu.memory_space<vmem>>, vector<8x32xf32>
    tpu.vector_store %arg13[%170, %c32_44], %169 {strides = array<i32>} : memref<64x64xf32, #tpu.memory_space<vmem>>, vector<8x32xf32>,
    %c4_i32 = arith.constant 4 : i32
    %c8_i32_45 = arith.constant 8 : i32
    %172 = arith.muli %c4_i32, %c8_i32_45 : i32
    %173 = tpu.assume_multiple %172, 8 : i32
    %174 = arith.index_cast %173 : i32 to index
    %c0_46 = arith.constant 0 : index
    %175 = vector.load %arg12[%174, %c0_46] : memref<64x192xf32, #tpu.memory_space<vmem>>, vector<8x192xf32>
    %176 = arith.truncf %162 : vector<8x64xf32> to vector<8x64xbf16>
    %cst_47 = arith.constant dense<0.000000e+00> : vector<8x192xf32>
    %177 = tpu.matmul %176, %7, %cst_47 {dimension_numbers = #tpu.dot_dimension_numbers<[1], [0], [0], [1], [0, 0, 1, 1], [], []>} : vector<8x64xbf16>, vector<64x192xbf16>, vector<8x192xf32> -> vector<8x192xf32>
    %178 = vector.extract_strided_slice %175 {offsets = [0, 0], sizes = [8, 64], strides = [1, 1]} : vector<8x192xf32> to vector<8x64xf32>
    %179 = vector.extract_strided_slice %177 {offsets = [0, 0], sizes = [8, 64], strides = [1, 1]} : vector<8x192xf32> to vector<8x64xf32>
    %180 = arith.addf %178, %179 : vector<8x64xf32>
    %181 = arith.negf %180 : vector<8x64xf32>
    %182 = math.exp %181 : vector<8x64xf32>
    %cst_48 = arith.constant 1.000000e+00 : f32
    %183 = vector.broadcast %cst_48 : f32 to vector<8x64xf32>
    %184 = arith.addf %183, %182 : vector<8x64xf32>
    %185 = arith.divf %183, %184 : vector<8x64xf32>
    %186 = vector.extract_strided_slice %175 {offsets = [0, 64], sizes = [8, 64], strides = [1, 1]} : vector<8x192xf32> to vector<8x64xf32>
    %187 = vector.extract_strided_slice %177 {offsets = [0, 64], sizes = [8, 64], strides = [1, 1]} : vector<8x192xf32> to vector<8x64xf32>
    %188 = arith.addf %186, %187 : vector<8x64xf32>
    %189 = arith.negf %188 : vector<8x64xf32>
    %190 = math.exp %189 : vector<8x64xf32>
    %cst_49 = arith.constant 1.000000e+00 : f32
    %191 = vector.broadcast %cst_49 : f32 to vector<8x64xf32>
    %192 = arith.addf %191, %190 : vector<8x64xf32>
    %193 = arith.divf %191, %192 : vector<8x64xf32>
    %194 = vector.extract_strided_slice %175 {offsets = [0, 128], sizes = [8, 64], strides = [1, 1]} : vector<8x192xf32> to vector<8x64xf32>
    %195 = vector.extract_strided_slice %177 {offsets = [0, 128], sizes = [8, 64], strides = [1, 1]} : vector<8x192xf32> to vector<8x64xf32>
    %196 = arith.addf %195, %10 : vector<8x64xf32>
    %197 = arith.mulf %185, %196 : vector<8x64xf32>
    %198 = arith.addf %194, %197 : vector<8x64xf32>
    %199 = math.tanh %198 : vector<8x64xf32>
    %200 = arith.subf %162, %199 : vector<8x64xf32>
    %201 = arith.mulf %193, %200 : vector<8x64xf32>
    %202 = arith.addf %199, %201 : vector<8x64xf32>
    %203 = vector.extract_strided_slice %202 {offsets = [0, 0], sizes = [8, 32], strides = [1, 1]} : vector<8x64xf32> to vector<8x32xf32>
    %204 = arith.index_cast %173 : i32 to index
    %c0_50 = arith.constant 0 : index
    %205 = vector.load %arg13[%204, %c0_50] : memref<64x64xf32, #tpu.memory_space<vmem>>, vector<8x32xf32>
    tpu.vector_store %arg13[%204, %c0_50], %203 {strides = array<i32>} : memref<64x64xf32, #tpu.memory_space<vmem>>, vector<8x32xf32>,
    %c7_i32_51 = arith.constant 7 : i32
    %206 = arith.subi %c7_i32_51, %c4_i32 : i32
    %c8_i32_52 = arith.constant 8 : i32
    %207 = arith.muli %206, %c8_i32_52 : i32
    %208 = tpu.assume_multiple %207, 8 : i32
    %209 = vector.extract_strided_slice %202 {offsets = [0, 32], sizes = [8, 32], strides = [1, 1]} : vector<8x64xf32> to vector<8x32xf32>
    %210 = arith.index_cast %208 : i32 to index
    %c32_53 = arith.constant 32 : index
    %211 = vector.load %arg13[%210, %c32_53] : memref<64x64xf32, #tpu.memory_space<vmem>>, vector<8x32xf32>
    tpu.vector_store %arg13[%210, %c32_53], %209 {strides = array<i32>} : memref<64x64xf32, #tpu.memory_space<vmem>>, vector<8x32xf32>,
    %c5_i32 = arith.constant 5 : i32
    %c8_i32_54 = arith.constant 8 : i32
    %212 = arith.muli %c5_i32, %c8_i32_54 : i32
    %213 = tpu.assume_multiple %212, 8 : i32
    %214 = arith.index_cast %213 : i32 to index
    %c0_55 = arith.constant 0 : index
    %215 = vector.load %arg12[%214, %c0_55] : memref<64x192xf32, #tpu.memory_space<vmem>>, vector<8x192xf32>
    %216 = arith.truncf %202 : vector<8x64xf32> to vector<8x64xbf16>
    %cst_56 = arith.constant dense<0.000000e+00> : vector<8x192xf32>
    %217 = tpu.matmul %216, %7, %cst_56 {dimension_numbers = #tpu.dot_dimension_numbers<[1], [0], [0], [1], [0, 0, 1, 1], [], []>} : vector<8x64xbf16>, vector<64x192xbf16>, vector<8x192xf32> -> vector<8x192xf32>
    %218 = vector.extract_strided_slice %215 {offsets = [0, 0], sizes = [8, 64], strides = [1, 1]} : vector<8x192xf32> to vector<8x64xf32>
    %219 = vector.extract_strided_slice %217 {offsets = [0, 0], sizes = [8, 64], strides = [1, 1]} : vector<8x192xf32> to vector<8x64xf32>
    %220 = arith.addf %218, %219 : vector<8x64xf32>
    %221 = arith.negf %220 : vector<8x64xf32>
    %222 = math.exp %221 : vector<8x64xf32>
    %cst_57 = arith.constant 1.000000e+00 : f32
    %223 = vector.broadcast %cst_57 : f32 to vector<8x64xf32>
    %224 = arith.addf %223, %222 : vector<8x64xf32>
    %225 = arith.divf %223, %224 : vector<8x64xf32>
    %226 = vector.extract_strided_slice %215 {offsets = [0, 64], sizes = [8, 64], strides = [1, 1]} : vector<8x192xf32> to vector<8x64xf32>
    %227 = vector.extract_strided_slice %217 {offsets = [0, 64], sizes = [8, 64], strides = [1, 1]} : vector<8x192xf32> to vector<8x64xf32>
    %228 = arith.addf %226, %227 : vector<8x64xf32>
    %229 = arith.negf %228 : vector<8x64xf32>
    %230 = math.exp %229 : vector<8x64xf32>
    %cst_58 = arith.constant 1.000000e+00 : f32
    %231 = vector.broadcast %cst_58 : f32 to vector<8x64xf32>
    %232 = arith.addf %231, %230 : vector<8x64xf32>
    %233 = arith.divf %231, %232 : vector<8x64xf32>
    %234 = vector.extract_strided_slice %215 {offsets = [0, 128], sizes = [8, 64], strides = [1, 1]} : vector<8x192xf32> to vector<8x64xf32>
    %235 = vector.extract_strided_slice %217 {offsets = [0, 128], sizes = [8, 64], strides = [1, 1]} : vector<8x192xf32> to vector<8x64xf32>
    %236 = arith.addf %235, %10 : vector<8x64xf32>
    %237 = arith.mulf %225, %236 : vector<8x64xf32>
    %238 = arith.addf %234, %237 : vector<8x64xf32>
    %239 = math.tanh %238 : vector<8x64xf32>
    %240 = arith.subf %202, %239 : vector<8x64xf32>
    %241 = arith.mulf %233, %240 : vector<8x64xf32>
    %242 = arith.addf %239, %241 : vector<8x64xf32>
    %243 = vector.extract_strided_slice %242 {offsets = [0, 0], sizes = [8, 32], strides = [1, 1]} : vector<8x64xf32> to vector<8x32xf32>
    %244 = arith.index_cast %213 : i32 to index
    %c0_59 = arith.constant 0 : index
    %245 = vector.load %arg13[%244, %c0_59] : memref<64x64xf32, #tpu.memory_space<vmem>>, vector<8x32xf32>
    tpu.vector_store %arg13[%244, %c0_59], %243 {strides = array<i32>} : memref<64x64xf32, #tpu.memory_space<vmem>>, vector<8x32xf32>,
    %c7_i32_60 = arith.constant 7 : i32
    %246 = arith.subi %c7_i32_60, %c5_i32 : i32
    %c8_i32_61 = arith.constant 8 : i32
    %247 = arith.muli %246, %c8_i32_61 : i32
    %248 = tpu.assume_multiple %247, 8 : i32
    %249 = vector.extract_strided_slice %242 {offsets = [0, 32], sizes = [8, 32], strides = [1, 1]} : vector<8x64xf32> to vector<8x32xf32>
    %250 = arith.index_cast %248 : i32 to index
    %c32_62 = arith.constant 32 : index
    %251 = vector.load %arg13[%250, %c32_62] : memref<64x64xf32, #tpu.memory_space<vmem>>, vector<8x32xf32>
    tpu.vector_store %arg13[%250, %c32_62], %249 {strides = array<i32>} : memref<64x64xf32, #tpu.memory_space<vmem>>, vector<8x32xf32>,
    %c6_i32 = arith.constant 6 : i32
    %c8_i32_63 = arith.constant 8 : i32
    %252 = arith.muli %c6_i32, %c8_i32_63 : i32
    %253 = tpu.assume_multiple %252, 8 : i32
    %254 = arith.index_cast %253 : i32 to index
    %c0_64 = arith.constant 0 : index
    %255 = vector.load %arg12[%254, %c0_64] : memref<64x192xf32, #tpu.memory_space<vmem>>, vector<8x192xf32>
    %256 = arith.truncf %242 : vector<8x64xf32> to vector<8x64xbf16>
    %cst_65 = arith.constant dense<0.000000e+00> : vector<8x192xf32>
    %257 = tpu.matmul %256, %7, %cst_65 {dimension_numbers = #tpu.dot_dimension_numbers<[1], [0], [0], [1], [0, 0, 1, 1], [], []>} : vector<8x64xbf16>, vector<64x192xbf16>, vector<8x192xf32> -> vector<8x192xf32>
    %258 = vector.extract_strided_slice %255 {offsets = [0, 0], sizes = [8, 64], strides = [1, 1]} : vector<8x192xf32> to vector<8x64xf32>
    %259 = vector.extract_strided_slice %257 {offsets = [0, 0], sizes = [8, 64], strides = [1, 1]} : vector<8x192xf32> to vector<8x64xf32>
    %260 = arith.addf %258, %259 : vector<8x64xf32>
    %261 = arith.negf %260 : vector<8x64xf32>
    %262 = math.exp %261 : vector<8x64xf32>
    %cst_66 = arith.constant 1.000000e+00 : f32
    %263 = vector.broadcast %cst_66 : f32 to vector<8x64xf32>
    %264 = arith.addf %263, %262 : vector<8x64xf32>
    %265 = arith.divf %263, %264 : vector<8x64xf32>
    %266 = vector.extract_strided_slice %255 {offsets = [0, 64], sizes = [8, 64], strides = [1, 1]} : vector<8x192xf32> to vector<8x64xf32>
    %267 = vector.extract_strided_slice %257 {offsets = [0, 64], sizes = [8, 64], strides = [1, 1]} : vector<8x192xf32> to vector<8x64xf32>
    %268 = arith.addf %266, %267 : vector<8x64xf32>
    %269 = arith.negf %268 : vector<8x64xf32>
    %270 = math.exp %269 : vector<8x64xf32>
    %cst_67 = arith.constant 1.000000e+00 : f32
    %271 = vector.broadcast %cst_67 : f32 to vector<8x64xf32>
    %272 = arith.addf %271, %270 : vector<8x64xf32>
    %273 = arith.divf %271, %272 : vector<8x64xf32>
    %274 = vector.extract_strided_slice %255 {offsets = [0, 128], sizes = [8, 64], strides = [1, 1]} : vector<8x192xf32> to vector<8x64xf32>
    %275 = vector.extract_strided_slice %257 {offsets = [0, 128], sizes = [8, 64], strides = [1, 1]} : vector<8x192xf32> to vector<8x64xf32>
    %276 = arith.addf %275, %10 : vector<8x64xf32>
    %277 = arith.mulf %265, %276 : vector<8x64xf32>
    %278 = arith.addf %274, %277 : vector<8x64xf32>
    %279 = math.tanh %278 : vector<8x64xf32>
    %280 = arith.subf %242, %279 : vector<8x64xf32>
    %281 = arith.mulf %273, %280 : vector<8x64xf32>
    %282 = arith.addf %279, %281 : vector<8x64xf32>
    %283 = vector.extract_strided_slice %282 {offsets = [0, 0], sizes = [8, 32], strides = [1, 1]} : vector<8x64xf32> to vector<8x32xf32>
    %284 = arith.index_cast %253 : i32 to index
    %c0_68 = arith.constant 0 : index
    %285 = vector.load %arg13[%284, %c0_68] : memref<64x64xf32, #tpu.memory_space<vmem>>, vector<8x32xf32>
    tpu.vector_store %arg13[%284, %c0_68], %283 {strides = array<i32>} : memref<64x64xf32, #tpu.memory_space<vmem>>, vector<8x32xf32>,
    %c7_i32_69 = arith.constant 7 : i32
    %286 = arith.subi %c7_i32_69, %c6_i32 : i32
    %c8_i32_70 = arith.constant 8 : i32
    %287 = arith.muli %286, %c8_i32_70 : i32
    %288 = tpu.assume_multiple %287, 8 : i32
    %289 = vector.extract_strided_slice %282 {offsets = [0, 32], sizes = [8, 32], strides = [1, 1]} : vector<8x64xf32> to vector<8x32xf32>
    %290 = arith.index_cast %288 : i32 to index
    %c32_71 = arith.constant 32 : index
    %291 = vector.load %arg13[%290, %c32_71] : memref<64x64xf32, #tpu.memory_space<vmem>>, vector<8x32xf32>
    tpu.vector_store %arg13[%290, %c32_71], %289 {strides = array<i32>} : memref<64x64xf32, #tpu.memory_space<vmem>>, vector<8x32xf32>,
    %c7_i32_72 = arith.constant 7 : i32
    %c8_i32_73 = arith.constant 8 : i32
    %292 = arith.muli %c7_i32_72, %c8_i32_73 : i32
    %293 = tpu.assume_multiple %292, 8 : i32
    %294 = arith.index_cast %293 : i32 to index
    %c0_74 = arith.constant 0 : index
    %295 = vector.load %arg12[%294, %c0_74] : memref<64x192xf32, #tpu.memory_space<vmem>>, vector<8x192xf32>
    %296 = arith.truncf %282 : vector<8x64xf32> to vector<8x64xbf16>
    %cst_75 = arith.constant dense<0.000000e+00> : vector<8x192xf32>
    %297 = tpu.matmul %296, %7, %cst_75 {dimension_numbers = #tpu.dot_dimension_numbers<[1], [0], [0], [1], [0, 0, 1, 1], [], []>} : vector<8x64xbf16>, vector<64x192xbf16>, vector<8x192xf32> -> vector<8x192xf32>
    %298 = vector.extract_strided_slice %295 {offsets = [0, 0], sizes = [8, 64], strides = [1, 1]} : vector<8x192xf32> to vector<8x64xf32>
    %299 = vector.extract_strided_slice %297 {offsets = [0, 0], sizes = [8, 64], strides = [1, 1]} : vector<8x192xf32> to vector<8x64xf32>
    %300 = arith.addf %298, %299 : vector<8x64xf32>
    %301 = arith.negf %300 : vector<8x64xf32>
    %302 = math.exp %301 : vector<8x64xf32>
    %cst_76 = arith.constant 1.000000e+00 : f32
    %303 = vector.broadcast %cst_76 : f32 to vector<8x64xf32>
    %304 = arith.addf %303, %302 : vector<8x64xf32>
    %305 = arith.divf %303, %304 : vector<8x64xf32>
    %306 = vector.extract_strided_slice %295 {offsets = [0, 64], sizes = [8, 64], strides = [1, 1]} : vector<8x192xf32> to vector<8x64xf32>
    %307 = vector.extract_strided_slice %297 {offsets = [0, 64], sizes = [8, 64], strides = [1, 1]} : vector<8x192xf32> to vector<8x64xf32>
    %308 = arith.addf %306, %307 : vector<8x64xf32>
    %309 = arith.negf %308 : vector<8x64xf32>
    %310 = math.exp %309 : vector<8x64xf32>
    %cst_77 = arith.constant 1.000000e+00 : f32
    %311 = vector.broadcast %cst_77 : f32 to vector<8x64xf32>
    %312 = arith.addf %311, %310 : vector<8x64xf32>
    %313 = arith.divf %311, %312 : vector<8x64xf32>
    %314 = vector.extract_strided_slice %295 {offsets = [0, 128], sizes = [8, 64], strides = [1, 1]} : vector<8x192xf32> to vector<8x64xf32>
    %315 = vector.extract_strided_slice %297 {offsets = [0, 128], sizes = [8, 64], strides = [1, 1]} : vector<8x192xf32> to vector<8x64xf32>
    %316 = arith.addf %315, %10 : vector<8x64xf32>
    %317 = arith.mulf %305, %316 : vector<8x64xf32>
    %318 = arith.addf %314, %317 : vector<8x64xf32>
    %319 = math.tanh %318 : vector<8x64xf32>
    %320 = arith.subf %282, %319 : vector<8x64xf32>
    %321 = arith.mulf %313, %320 : vector<8x64xf32>
    %322 = arith.addf %319, %321 : vector<8x64xf32>
    %323 = vector.extract_strided_slice %322 {offsets = [0, 0], sizes = [8, 32], strides = [1, 1]} : vector<8x64xf32> to vector<8x32xf32>
    %324 = arith.index_cast %293 : i32 to index
    %c0_78 = arith.constant 0 : index
    %325 = vector.load %arg13[%324, %c0_78] : memref<64x64xf32, #tpu.memory_space<vmem>>, vector<8x32xf32>
    tpu.vector_store %arg13[%324, %c0_78], %323 {strides = array<i32>} : memref<64x64xf32, #tpu.memory_space<vmem>>, vector<8x32xf32>,
    %c7_i32_79 = arith.constant 7 : i32
    %326 = arith.subi %c7_i32_79, %c7_i32_72 : i32
    %c8_i32_80 = arith.constant 8 : i32
    %327 = arith.muli %326, %c8_i32_80 : i32
    %328 = tpu.assume_multiple %327, 8 : i32
    %329 = vector.extract_strided_slice %322 {offsets = [0, 32], sizes = [8, 32], strides = [1, 1]} : vector<8x64xf32> to vector<8x32xf32>
    %330 = arith.index_cast %328 : i32 to index
    %c32_81 = arith.constant 32 : index
    %331 = vector.load %arg13[%330, %c32_81] : memref<64x64xf32, #tpu.memory_space<vmem>>, vector<8x32xf32>
    tpu.vector_store %arg13[%330, %c32_81], %329 {strides = array<i32>} : memref<64x64xf32, #tpu.memory_space<vmem>>, vector<8x32xf32>,
    %c8_i32_82 = arith.constant 8 : i32
    %c0_83 = arith.constant 0 : index
    %c0_84 = arith.constant 0 : index
    %332 = vector.load %arg13[%c0_83, %c0_84] : memref<64x64xf32, #tpu.memory_space<vmem>>, vector<64x64xf32>
    %333 = arith.truncf %332 : vector<64x64xf32> to vector<64x64xbf16>
    %c0_85 = arith.constant 0 : index
    %c0_86 = arith.constant 0 : index
    %334 = vector.load %arg5[%c0_85, %c0_86] : memref<64x16xbf16, #tpu.memory_space<vmem>>, vector<64x16xbf16>
    %cst_87 = arith.constant dense<0.000000e+00> : vector<64x16xf32>
    %335 = tpu.matmul %333, %334, %cst_87 {dimension_numbers = #tpu.dot_dimension_numbers<[1], [0], [0], [1], [0, 0, 1, 1], [], []>} : vector<64x64xbf16>, vector<64x16xbf16>, vector<64x16xf32> -> vector<64x16xf32>
    %c0_88 = arith.constant 0 : index
    %c0_89 = arith.constant 0 : index
    %336 = vector.load %arg6[%c0_88, %c0_89] : memref<1x16xf32, #tpu.memory_space<vmem>>, vector<1x16xf32>
    %337 = vector.broadcast %336 : vector<1x16xf32> to vector<64x16xf32>
    %338 = arith.addf %335, %337 : vector<64x16xf32>
    %cst_90 = arith.constant 0.000000e+00 : f32
    %339 = vector.broadcast %cst_90 : f32 to vector<64x16xf32>
    %340 = arith.maximumf %338, %339 : vector<64x16xf32>
    %341 = vector.extract_strided_slice %340 {offsets = [0, 0], sizes = [8, 16], strides = [1, 1]} : vector<64x16xf32> to vector<8x16xf32>
    %342 = vector.extract_strided_slice %340 {offsets = [8, 0], sizes = [8, 16], strides = [1, 1]} : vector<64x16xf32> to vector<8x16xf32>
    %343 = arith.maximumf %341, %342 : vector<8x16xf32>
    %344 = vector.extract_strided_slice %340 {offsets = [16, 0], sizes = [8, 16], strides = [1, 1]} : vector<64x16xf32> to vector<8x16xf32>
    %345 = arith.maximumf %343, %344 : vector<8x16xf32>
    %346 = vector.extract_strided_slice %340 {offsets = [24, 0], sizes = [8, 16], strides = [1, 1]} : vector<64x16xf32> to vector<8x16xf32>
    %347 = arith.maximumf %345, %346 : vector<8x16xf32>
    %348 = vector.extract_strided_slice %340 {offsets = [32, 0], sizes = [8, 16], strides = [1, 1]} : vector<64x16xf32> to vector<8x16xf32>
    %349 = arith.maximumf %347, %348 : vector<8x16xf32>
    %350 = vector.extract_strided_slice %340 {offsets = [40, 0], sizes = [8, 16], strides = [1, 1]} : vector<64x16xf32> to vector<8x16xf32>
    %351 = arith.maximumf %349, %350 : vector<8x16xf32>
    %352 = vector.extract_strided_slice %340 {offsets = [48, 0], sizes = [8, 16], strides = [1, 1]} : vector<64x16xf32> to vector<8x16xf32>
    %353 = arith.maximumf %351, %352 : vector<8x16xf32>
    %354 = vector.extract_strided_slice %340 {offsets = [56, 0], sizes = [8, 16], strides = [1, 1]} : vector<64x16xf32> to vector<8x16xf32>
    %355 = arith.maximumf %353, %354 : vector<8x16xf32>
    %356 = tpu.concatenate %322, %355 in 1 : vector<8x64xf32>, vector<8x16xf32> -> vector<8x80xf32>
    %357 = arith.truncf %356 : vector<8x80xf32> to vector<8x80xbf16>
    %c0_91 = arith.constant 0 : index
    %c0_92 = arith.constant 0 : index
    %358 = vector.load %arg7[%c0_91, %c0_92] : memref<80x32xbf16, #tpu.memory_space<vmem>>, vector<80x32xbf16>
    %cst_93 = arith.constant dense<0.000000e+00> : vector<8x32xf32>
    %359 = tpu.matmul %357, %358, %cst_93 {dimension_numbers = #tpu.dot_dimension_numbers<[1], [0], [0], [1], [0, 0, 1, 1], [], []>} : vector<8x80xbf16>, vector<80x32xbf16>, vector<8x32xf32> -> vector<8x32xf32>
    %c0_94 = arith.constant 0 : index
    %c0_95 = arith.constant 0 : index
    %360 = vector.load %arg8[%c0_94, %c0_95] : memref<1x32xf32, #tpu.memory_space<vmem>>, vector<1x32xf32>
    %361 = vector.broadcast %360 : vector<1x32xf32> to vector<8x32xf32>
    %362 = arith.addf %359, %361 : vector<8x32xf32>
    %cst_96 = arith.constant 0.000000e+00 : f32
    %363 = vector.broadcast %cst_96 : f32 to vector<8x32xf32>
    %364 = arith.maximumf %362, %363 : vector<8x32xf32>
    %365 = arith.truncf %364 : vector<8x32xf32> to vector<8x32xbf16>
    %c0_97 = arith.constant 0 : index
    %c0_98 = arith.constant 0 : index
    %366 = vector.load %arg9[%c0_97, %c0_98] : memref<32x4xbf16, #tpu.memory_space<vmem>>, vector<32x4xbf16>
    %cst_99 = arith.constant dense<0.000000e+00> : vector<8x4xf32>
    %367 = tpu.matmul %365, %366, %cst_99 {dimension_numbers = #tpu.dot_dimension_numbers<[1], [0], [0], [1], [0, 0, 1, 1], [], []>} : vector<8x32xbf16>, vector<32x4xbf16>, vector<8x4xf32> -> vector<8x4xf32>
    %c0_100 = arith.constant 0 : index
    %c0_101 = arith.constant 0 : index
    %368 = vector.load %arg10[%c0_100, %c0_101] : memref<1x4xf32, #tpu.memory_space<vmem>>, vector<1x4xf32>
    %369 = vector.broadcast %368 : vector<1x4xf32> to vector<8x4xf32>
    %370 = arith.addf %367, %369 : vector<8x4xf32>
    %c0_102 = arith.constant 0 : index
    %c0_103 = arith.constant 0 : index
    %371 = vector.load %arg11[%c0_102, %c0_103] : memref<8x4xf32, #tpu.memory_space<vmem>>, vector<8x4xf32>
    tpu.vector_store %arg11[%c0_102, %c0_103], %370 {strides = array<i32>} : memref<8x4xf32, #tpu.memory_space<vmem>>, vector<8x4xf32>,
    return
  }
}

</mosaic_0001>

<llo_original>
// kernel: tpu_custom_call.1
$region0: #{tpu_custom_call.1}
  #allocation0 [shape = 'u32[]', space=smem, size = 0x4, offset = 0x4, fixed_abs, tag = 'smem constant byte address 0x4 - core index']
  #allocation1 [shape = 'u32[144,128]{1,0:T(1,128)}', space=vmem, size = 0x12000, scoped, tag = 'internal scratch']
  #allocation2 [shape = 'f32[64,192]{1,0:T(8,128)}', space=vmem, size = 0x10000, scoped, tag = 'scratch operand']
  #allocation3 [shape = 'f32[64,64]{1,0:T(8,128)}', space=vmem, size = 0x8000, scoped, tag = 'scratch operand']
  %s0 = inlined_call_operand.vmem [shape: bf16[64,80], index: 0, kind: input, shape index: {}]
  %s1 = inlined_call_operand.vmem [shape: bf16[80,192], index: 1, kind: input, shape index: {}]
  %s2 = inlined_call_operand.hbm [shape: f32[1,192], index: 2, kind: input, shape index: {}]
  %s3 = inlined_call_operand.hbm [shape: bf16[64,192], index: 3, kind: input, shape index: {}]
  %s4 = inlined_call_operand.vmem [shape: f32[1,64], index: 4, kind: input, shape index: {}]
  %s5 = inlined_call_operand.vmem [shape: bf16[64,16], index: 5, kind: input, shape index: {}]
  %s6 = inlined_call_operand.vmem [shape: f32[1,16], index: 6, kind: input, shape index: {}]
  %s7 = inlined_call_operand.vmem [shape: bf16[80,32], index: 7, kind: input, shape index: {}]
  %s8 = inlined_call_operand.vmem [shape: f32[1,32], index: 8, kind: input, shape index: {}]
  %s9 = inlined_call_operand.vmem [shape: bf16[32,4], index: 9, kind: input, shape index: {}]
  %s10 = inlined_call_operand.vmem [shape: f32[1,4], index: 10, kind: input, shape index: {}]
  %s11 = inlined_call_operand.vmem [shape: f32[8,4], index: 11, kind: output, shape index: {}]
  %s12 = sld [smem:[#allocation0]]
  $region62: #{tpu_custom_call.1} parent=0
    _
  %s14 = ssub.s32 1, %s12
  %s15 = scalar_select 0, %s14, %s12
  $region1: #{tpu_custom_call.1} parent=0
    #allocation4 [shape = 'u8[1024]{0}', space=vmem, size = 0x400, scoped, tag = 'input window, operand 2, single buffered']
    #allocation5 [shape = 's32[1]{0}', space=sflag, size = 0x4, scoped, tag = 'scoped memory for tpu_custom_call.1']
    #allocation6 [shape = 'u8[32768]{0}', space=vmem, size = 0x8000, scoped, tag = 'input window, operand 3, single buffered']
    #allocation7 [shape = 's32[1]{0}', space=sflag, size = 0x4, scoped, tag = 'scoped memory for tpu_custom_call.1']
    %16 = vsyncpa [#allocation5], 0
    %17 = vsyncpa [#allocation7], 0
    // Predicated region
    $region2: #{tpu_custom_call.1} parent=1 // pred_check
      _
    $region3: #{tpu_custom_call.1} parent=1 // pred_check_branch
      %19 = sbr.rel (0) target = $region5
    $region4: #{tpu_custom_call.1} parent=1 // pred_region
      _
    $region5: #{tpu_custom_call.1} parent=1 // pred_fallthru
      _
    // Predicated region
    $region6: #{tpu_custom_call.1} parent=1 // pred_check
      _
    $region7: #{tpu_custom_call.1} parent=1 // pred_check_branch
      %21 = sbr.rel (0) target = $region9
    $region8: #{tpu_custom_call.1} parent=1 // pred_region
      _
    $region9: #{tpu_custom_call.1} parent=1 // pred_fallthru
      _
    // Predicated region
    $region10: #{tpu_custom_call.1} parent=1 // pred_check
      _
    $region11: #{tpu_custom_call.1} parent=1 // pred_check_branch
      %23 = sbr.rel (0) target = $region13
    $region12: #{tpu_custom_call.1} parent=1 // pred_region
      %s25 = ssub.s32 32, 32
      %26 = vsyncadd [#allocation5], %s25
      %s28 = sshll.u32 [#allocation4], 4
      %s29 = int_to_ptr.vmem [resolvable:$true] %s28
      %31 = dma.hbm_to_vmem [thread:$0]  %s2, 32, %s29, [#allocation5]
    $region13: #{tpu_custom_call.1} parent=1 // pred_fallthru
      _
    // Predicated region
    $region14: #{tpu_custom_call.1} parent=1 // pred_check
      _
    $region15: #{tpu_custom_call.1} parent=1 // pred_check_branch
      %33 = sbr.rel (0) target = $region17
    $region16: #{tpu_custom_call.1} parent=1 // pred_region
      %s35 = ssub.s32 1024, 1024
      %36 = vsyncadd [#allocation7], %s35
      %s37 = sshll.u32 [#allocation6], 4
      %s38 = int_to_ptr.vmem [resolvable:$true] %s37
      %43 = dma.hbm_to_vmem [thread:$0]  %s3, 1024, %s38, [#allocation7], 128, 128, 8
    $region17: #{tpu_custom_call.1} parent=1 // pred_fallthru
      _
    // Predicated region
    $region18: #{tpu_custom_call.1} parent=1 // pred_check
      _
    $region19: #{tpu_custom_call.1} parent=1 // pred_check_branch
      %45 = sbr.rel (0) target = $region21
    $region20: #{tpu_custom_call.1} parent=1 // pred_region
      _
    $region21: #{tpu_custom_call.1} parent=1 // pred_fallthru
      _
    // Predicated region
    $region22: #{tpu_custom_call.1} parent=1 // pred_check
      _
    $region23: #{tpu_custom_call.1} parent=1 // pred_check_branch
      %47 = sbr.rel (0) target = $region25
    $region24: #{tpu_custom_call.1} parent=1 // pred_region
      _
    $region25: #{tpu_custom_call.1} parent=1 // pred_fallthru
      _
    // Predicated region
    $region26: #{tpu_custom_call.1} parent=1 // pred_check
      _
    $region27: #{tpu_custom_call.1} parent=1 // pred_check_branch
      %49 = sbr.rel (0) target = $region29
    $region28: #{tpu_custom_call.1} parent=1 // pred_region
      _
    $region29: #{tpu_custom_call.1} parent=1 // pred_fallthru
      _
    // Predicated region
    $region30: #{tpu_custom_call.1} parent=1 // pred_check
      _
    $region31: #{tpu_custom_call.1} parent=1 // pred_check_branch
      %51 = sbr.rel (0) target = $region33
    $region32: #{tpu_custom_call.1} parent=1 // pred_region
      _
    $region33: #{tpu_custom_call.1} parent=1 // pred_fallthru
      _
    // Predicated region
    $region34: #{tpu_custom_call.1} parent=1 // pred_check
      _
    $region35: #{tpu_custom_call.1} parent=1 // pred_check_branch
      %53 = sbr.rel (0) target = $region37
    $region36: #{tpu_custom_call.1} parent=1 // pred_region
      _
    $region37: #{tpu_custom_call.1} parent=1 // pred_fallthru
      _
    // Predicated region
    $region38: #{tpu_custom_call.1} parent=1 // pred_check
      _
    $region39: #{tpu_custom_call.1} parent=1 // pred_check_branch
      %55 = sbr.rel (0) target = $region41
    $region40: #{tpu_custom_call.1} parent=1 // pred_region
      _
    $region41: #{tpu_custom_call.1} parent=1 // pred_fallthru
      _
    // Predicated region
    $region42: #{tpu_custom_call.1} parent=1 // pred_check
      _
    $region43: #{tpu_custom_call.1} parent=1 // pred_check_branch
      %57 = sbr.rel (0) target = $region45
    $region44: #{tpu_custom_call.1} parent=1 // pred_region
      _
    $region45: #{tpu_custom_call.1} parent=1 // pred_fallthru
      _
    // Predicated region
    $region46: #{tpu_custom_call.1} parent=1 // pred_check
      _
    $region47: #{tpu_custom_call.1} parent=1 // pred_check_branch
      %59 = sbr.rel (0) target = $region49
    $region48: #{tpu_custom_call.1} parent=1 // pred_region
      %60 = dma.done [#allocation5], 32
    $region49: #{tpu_custom_call.1} parent=1 // pred_fallthru
      _
    // Predicated region
    $region50: #{tpu_custom_call.1} parent=1 // pred_check
      _
    $region51: #{tpu_custom_call.1} parent=1 // pred_check_branch
      %62 = sbr.rel (0) target = $region53
    $region52: #{tpu_custom_call.1} parent=1 // pred_region
      %63 = dma.done [#allocation7], 1024
    $region53: #{tpu_custom_call.1} parent=1 // pred_fallthru
      _
    %v65 = vld [vmem:[%s0] sm:$0xf]
    %v66 = vld [vmem:[%s0 + $0x4] sm:$0xf]
    %v67 = vld [vmem:[%s0 + $0x8] sm:$0xf]
    %v68 = vld [vmem:[%s0 + $0xc] sm:$0xf]
    %v69 = vld [vmem:[%s0 + $0x10] sm:$0xf]
    %v70 = vld [vmem:[%s0 + $0x14] sm:$0xf]
    %v71 = vld [vmem:[%s0 + $0x18] sm:$0xf]
    %v72 = vld [vmem:[%s0 + $0x1c] sm:$0xf]
    %v73 = vld [vmem:[%s1] sm:$0xff]
    %v74 = vld [vmem:[%s1 + $0x8] sm:$0xff]
    %v75 = vld [vmem:[%s1 + $0x10] sm:$0xff]
    %v76 = vld [vmem:[%s1 + $0x18] sm:$0xff]
    %v77 = vld [vmem:[%s1 + $0x20] sm:$0xff]
    %v78 = vld [vmem:[%s1 + $0x28] sm:$0xff]
    %v79 = vld [vmem:[%s1 + $0x30] sm:$0xff]
    %v80 = vld [vmem:[%s1 + $0x38] sm:$0xff]
    %v81 = vld [vmem:[%s1 + $0x40] sm:$0xff]
    %v82 = vld [vmem:[%s1 + $0x48] sm:$0xff]
    %v83 = vld [vmem:[#allocation4] sm:$0x3]
    %v85 = vlaneseq
    %v86 = vshrl.u32 %v85, 7
    %v87 = vsub.s32 0, %v86
    %v88 = vrot.slane %v83, %v87
    %v89 = vlaneseq
    %v90 = vshrl.u32 %v89, 7
    %v91 = vsub.s32 1, %v90
    %v92 = vrot.slane %v83, %v91
    %v103 = vunpack.c.l.b16 %v65
    %v104 = vunpack.c.l.b16 %v66
    %v105 = vunpack.c.l.b16 %v67
    %v106 = vunpack.c.l.b16 %v68
    %v107 = vunpack.c.l.b16 %v69
    %v108 = vunpack.c.l.b16 %v70
    %v109 = vunpack.c.l.b16 %v71
    %v110 = vunpack.c.l.b16 %v72
    %v111 = vpack.c.b16 %v104, %v103
    %v112 = vpack.c.b16 %v106, %v105
    %v113 = vpack.c.b16 %v108, %v107
    %v114 = vpack.c.b16 %v110, %v109
    %v125 = vunpack.c.l.b16 %v73
    %v126 = vunpack.c.h.b16 %v73
    %v127 = vunpack.c.l.b16 %v74
    %v128 = vunpack.c.h.b16 %v74
    %v129 = vunpack.c.l.b16 %v75
    %v130 = vunpack.c.h.b16 %v75
    %v131 = vunpack.c.l.b16 %v76
    %v132 = vunpack.c.h.b16 %v76
    %v133 = vunpack.c.l.b16 %v77
    %v134 = vunpack.c.h.b16 %v77
    %v135 = vunpack.c.l.b16 %v78
    %v136 = vunpack.c.h.b16 %v78
    %v137 = vunpack.c.l.b16 %v79
    %v138 = vunpack.c.h.b16 %v79
    %v139 = vunpack.c.l.b16 %v80
    %v140 = vunpack.c.h.b16 %v80
    %v141 = vunpack.c.l.b16 %v81
    %v142 = vunpack.c.h.b16 %v81
    %v143 = vunpack.c.l.b16 %v82
    %v144 = vunpack.c.h.b16 %v82
    %v145 = vpack.c.b16 %v127, %v125
    %v146 = vpack.c.b16 %v128, %v126
    %v147 = vpack.c.b16 %v131, %v129
    %v148 = vpack.c.b16 %v132, %v130
    %v149 = vpack.c.b16 %v135, %v133
    %v150 = vpack.c.b16 %v136, %v134
    %v151 = vpack.c.b16 %v139, %v137
    %v152 = vpack.c.b16 %v140, %v138
    %v153 = vpack.c.b16 %v143, %v141
    %v154 = vpack.c.b16 %v144, %v142
    %vm165 = vcmask 654336
    %v167 = vsel %vm165, %v111, 0
    %v170 = vsel %vm165, %v112, 0
    %v173 = vsel %vm165, %v113, 0
    %v176 = vsel %vm165, %v114, 0
    %178 = vmatprep.subr.bf16.mxu0 %v146
    %179 = vmatpush1.bf16.msra.mxu0 %v145
    %180 = vmatprep.subr.bf16.mxu0 %v148
    %181 = vmatpush1.bf16.msra.mxu0 %v147
    %182 = vmatprep.subr.bf16.mxu0 %v150
    %183 = vmatpush1.bf16.msra.mxu0 %v149
    %184 = vmatprep.subr.bf16.mxu0 %v152
    %185 = vmatpush1.bf16.msra.mxu0 %v151
    %186 = vmatprep.subr.bf16.mxu0 %v154
    %187 = vmatpush1.bf16.msra.mxu0 %v153
    %188 = vmatprep.subr.bf16.mxu0 0
    %189 = vmatpush1.bf16.msra.mxu0 0
    %190 = vmatprep.subr.bf16.mxu0 0
    %191 = vmatpush1.bf16.msra.mxu0 0
    %192 = vmatprep.subr.bf16.mxu0 0
    %193 = vmatpush1.bf16.msra.mxu0 0
    %194 = vmatprep.subr.bf16.mxu0 0
    %195 = vmatpush1.bf16.msra.mxu0 0
    %196 = vmatprep.subr.bf16.mxu0 0
    %197 = vmatpush1.bf16.msra.mxu0 0
    %198 = vmatprep.subr.bf16.mxu0 0
    %199 = vmatpush1.bf16.msra.mxu0 0
    %200 = vmatprep.subr.bf16.mxu0 0
    %201 = vmatpush1.bf16.msra.mxu0 0
    %202 = vmatprep.subr.bf16.mxu0 0
    %203 = vmatpush1.bf16.msra.mxu0 0
    %204 = vmatprep.subr.bf16.mxu0 0
    %205 = vmatpush1.bf16.msra.mxu0 0
    %206 = vmatprep.subr.bf16.mxu0 0
    %207 = vmatpush1.bf16.msra.mxu0 0
    %208 = vmatprep.subr.bf16.mxu0 0
    %209 = vmatpush1.bf16.msra.mxu0 0
    %210 = vmatprep.mubr.bf16.mxu0 0
    %211 = vmatmul.mubr.bf16.gmra.mrb[0].mxu0 %v167
    %v212 = vpop.f32.mrb[0].mxu0
    %v213 = vadd.f32 %v88, %v212
    %v214 = vpop.f32.mrb[0].mxu0
    %v215 = vadd.f32 %v92, %v214
    %v216 = vpop.f32.mrb[0].mxu0
    %v217 = vadd.f32 %v88, %v216
    %v218 = vpop.f32.mrb[0].mxu0
    %v219 = vadd.f32 %v92, %v218
    %220 = vmatprep.mubr.bf16.mxu0 0
    %221 = vmatmul.mubr.bf16.gmra.mrb[0].mxu0 %v170
    %v222 = vpop.f32.mrb[0].mxu0
    %v223 = vadd.f32 %v88, %v222
    %v224 = vpop.f32.mrb[0].mxu0
    %v225 = vadd.f32 %v92, %v224
    %v226 = vpop.f32.mrb[0].mxu0
    %v227 = vadd.f32 %v88, %v226
    %v228 = vpop.f32.mrb[0].mxu0
    %v229 = vadd.f32 %v92, %v228
    %230 = vmatprep.mubr.bf16.mxu0 0
    %231 = vmatmul.mubr.bf16.gmra.mrb[0].mxu0 %v173
    %v232 = vpop.f32.mrb[0].mxu0
    %v233 = vadd.f32 %v88, %v232
    %v234 = vpop.f32.mrb[0].mxu0
    %v235 = vadd.f32 %v92, %v234
    %v236 = vpop.f32.mrb[0].mxu0
    %v237 = vadd.f32 %v88, %v236
    %v238 = vpop.f32.mrb[0].mxu0
    %v239 = vadd.f32 %v92, %v238
    %240 = vmatprep.mubr.bf16.mxu0 0
    %241 = vmatmul.mubr.bf16.gmra.mrb[0].mxu0 %v176
    %v242 = vpop.f32.mrb[0].mxu0
    %v243 = vadd.f32 %v88, %v242
    %v244 = vpop.f32.mrb[0].mxu0
    %v245 = vadd.f32 %v92, %v244
    %v246 = vpop.f32.mrb[0].mxu0
    %v247 = vadd.f32 %v88, %v246
    %v248 = vpop.f32.mrb[0].mxu0
    %v249 = vadd.f32 %v92, %v248
    %250 = vdwg.mxu0
    %251 = vst [vmem:[#allocation2] sm:$0xff] %v213
    %vm252 = vcmask 523264
    %253 = vst.msk [vmem:[#allocation2 + $0x8] sm:$0xff] %vm252, %v215
    %254 = vst [vmem:[#allocation2 + $0x10] sm:$0xff] %v217
    %255 = vst.msk [vmem:[#allocation2 + $0x18] sm:$0xff] %vm252, %v219
    %256 = vst [vmem:[#allocation2 + $0x20] sm:$0xff] %v223
    %257 = vst.msk [vmem:[#allocation2 + $0x28] sm:$0xff] %vm252, %v225
    %258 = vst [vmem:[#allocation2 + $0x30] sm:$0xff] %v227
    %259 = vst.msk [vmem:[#allocation2 + $0x38] sm:$0xff] %vm252, %v229
    %260 = vst [vmem:[#allocation2 + $0x40] sm:$0xff] %v233
    %261 = vst.msk [vmem:[#allocation2 + $0x48] sm:$0xff] %vm252, %v235
    %262 = vst [vmem:[#allocation2 + $0x50] sm:$0xff] %v237
    %263 = vst.msk [vmem:[#allocation2 + $0x58] sm:$0xff] %vm252, %v239
    %264 = vst [vmem:[#allocation2 + $0x60] sm:$0xff] %v243
    %265 = vst.msk [vmem:[#allocation2 + $0x68] sm:$0xff] %vm252, %v245
    %266 = vst [vmem:[#allocation2 + $0x70] sm:$0xff] %v247
    %267 = vst.msk [vmem:[#allocation2 + $0x78] sm:$0xff] %vm252, %v249
    %v268 = vld [vmem:[#allocation6] sm:$0xff]
    %v269 = vld [vmem:[#allocation6 + $0x8] sm:$0xff]
    %v270 = vld [vmem:[#allocation6 + $0x10] sm:$0xff]
    %v271 = vld [vmem:[#allocation6 + $0x18] sm:$0xff]
    %v272 = vld [vmem:[#allocation6 + $0x20] sm:$0xff]
    %v273 = vld [vmem:[#allocation6 + $0x28] sm:$0xff]
    %v274 = vld [vmem:[#allocation6 + $0x30] sm:$0xff]
    %v275 = vld [vmem:[#allocation6 + $0x38] sm:$0xff]
    %v276 = vld [vmem:[%s4] sm:$0x1]
    %v278 = vlaneseq
    %v279 = vshrl.u32 %v278, 7
    %v280 = vsub.s32 0, %v279
    %v281 = vrot.slane %v276, %v280
    %s283 = smul.u32 0, 2
    %s284 = smul.addr %s283, 8
    %s285 = scalar_lea.vmem [#allocation2], %s284
    %v286 = vld [vmem:[%s285] sm:$0xff]
    %v287 = vld [vmem:[%s285 + $0x8] sm:$0xff]
    %v296 = vunpack.c.l.b16 %v268
    %v297 = vunpack.c.h.b16 %v268
    %v298 = vunpack.c.l.b16 %v269
    %v299 = vunpack.c.h.b16 %v269
    %v300 = vunpack.c.l.b16 %v270
    %v301 = vunpack.c.h.b16 %v270
    %v302 = vunpack.c.l.b16 %v271
    %v303 = vunpack.c.h.b16 %v271
    %v304 = vunpack.c.l.b16 %v272
    %v305 = vunpack.c.h.b16 %v272
    %v306 = vunpack.c.l.b16 %v273
    %v307 = vunpack.c.h.b16 %v273
    %v308 = vunpack.c.l.b16 %v274
    %v309 = vunpack.c.h.b16 %v274
    %v310 = vunpack.c.l.b16 %v275
    %v311 = vunpack.c.h.b16 %v275
    %v312 = vpack.c.b16 %v298, %v296
    %v313 = vpack.c.b16 %v299, %v297
    %v314 = vpack.c.b16 %v302, %v300
    %v315 = vpack.c.b16 %v303, %v301
    %v316 = vpack.c.b16 %v306, %v304
    %v317 = vpack.c.b16 %v307, %v305
    %v318 = vpack.c.b16 %v310, %v308
    %v319 = vpack.c.b16 %v311, %v309
    %v329 = vsel %vm252, 0, 0
    %331 = vmatprep.subr.bf16.mxu0 %v313
    %332 = vmatpush1.bf16.msra.mxu0 %v312
    %333 = vmatprep.subr.bf16.mxu0 %v315
    %334 = vmatpush1.bf16.msra.mxu0 %v314
    %335 = vmatprep.subr.bf16.mxu0 %v317
    %336 = vmatpush1.bf16.msra.mxu0 %v316
    %337 = vmatprep.subr.bf16.mxu0 %v319
    %338 = vmatpush1.bf16.msra.mxu0 %v318
    %339 = vmatprep.subr.bf16.mxu0 0
    %340 = vmatpush1.bf16.msra.mxu0 0
    %341 = vmatprep.subr.bf16.mxu0 0
    %342 = vmatpush1.bf16.msra.mxu0 0
    %343 = vmatprep.subr.bf16.mxu0 0
    %344 = vmatpush1.bf16.msra.mxu0 0
    %345 = vmatprep.subr.bf16.mxu0 0
    %346 = vmatpush1.bf16.msra.mxu0 0
    %347 = vmatprep.subr.bf16.mxu0 0
    %348 = vmatpush1.bf16.msra.mxu0 0
    %349 = vmatprep.subr.bf16.mxu0 0
    %350 = vmatpush1.bf16.msra.mxu0 0
    %351 = vmatprep.subr.bf16.mxu0 0
    %352 = vmatpush1.bf16.msra.mxu0 0
    %353 = vmatprep.subr.bf16.mxu0 0
    %354 = vmatpush1.bf16.msra.mxu0 0
    %355 = vmatprep.subr.bf16.mxu0 0
    %356 = vmatpush1.bf16.msra.mxu0 0
    %357 = vmatprep.subr.bf16.mxu0 0
    %358 = vmatpush1.bf16.msra.mxu0 0
    %359 = vmatprep.subr.bf16.mxu0 0
    %360 = vmatpush1.bf16.msra.mxu0 0
    %361 = vmatprep.subr.bf16.mxu0 0
    %362 = vmatpush1.bf16.msra.mxu0 0
    %363 = vmatprep.mubr.bf16.mxu0 0
    %364 = vmatmul.mubr.bf16.gmra.mrb[0].mxu0 %v329
    %v365 = vpop.f32.mrb[0].mxu0
    %v366 = vadd.f32 0.0, %v365
    %v367 = vpop.f32.mrb[0].mxu0
    %v368 = vadd.f32 0.0, %v367
    %v369 = vpop.f32.mrb[0].mxu0
    %v370 = vpop.f32.mrb[0].mxu0
    %371 = vdwg.mxu0
    %v372 = vadd.f32 %v286, %v366
    %v373 = vxor.u32 %v372, 2147483648
    %v374 = vmul.f32 %v373, 1.442695
    %v375 = vpow.pop %v374
    %v376 = vadd.f32 %v375, 1.0
    %v377 = vrcp.pop %v376
    %v378 = vmul.f32 1.0, %v377
    %v379 = vadd.f32 %v368, %v281
    %v380 = vmul.f32 %v378, %v379
    %v381 = vadd.f32 %v287, %v380
    %v382 = vtanh.pop %v381
    %v383 = vsub.f32 0.0, %v382
    %385 = vrot.lane.b32.xlu0 %v383, 64
    %v386 = vpop.permute.xlu0 %385
    %v388 = vmul.f32 %v378, %v386
    %390 = vrot.lane.b32.xlu0 %v388, 64
    %v391 = vpop.permute.xlu0 %390
    %v393 = vadd.f32 %v382, %v391
    %vm394 = vcmask 261120
    %395 = vst.msk [vmem:[#allocation3] sm:$0xff] %vm394, %v393
    %s396 = scalar_lea.vmem [#allocation3], 56
    %vm397 = vcmask 523520
    %398 = vst.msk [vmem:[%s396] sm:$0xff] %vm397, %v393
    %s399 = smul.u32 1, 2
    %s400 = smul.addr %s399, 8
    %s401 = scalar_lea.vmem [#allocation2], %s400
    %v402 = vld [vmem:[%s401] sm:$0xff]
    %v403 = vld [vmem:[%s401 + $0x8] sm:$0xff]
    %v404 = vpack.c.bf16 %v393, %v393
    %v406 = vsel %vm252, %v404, 0
    %408 = vmatprep.subr.bf16.mxu0 %v313
    %409 = vmatpush1.bf16.msra.mxu0 %v312
    %410 = vmatprep.subr.bf16.mxu0 %v315
    %411 = vmatpush1.bf16.msra.mxu0 %v314
    %412 = vmatprep.subr.bf16.mxu0 %v317
    %413 = vmatpush1.bf16.msra.mxu0 %v316
    %414 = vmatprep.subr.bf16.mxu0 %v319
    %415 = vmatpush1.bf16.msra.mxu0 %v318
    %416 = vmatprep.subr.bf16.mxu0 0
    %417 = vmatpush1.bf16.msra.mxu0 0
    %418 = vmatprep.subr.bf16.mxu0 0
    %419 = vmatpush1.bf16.msra.mxu0 0
    %420 = vmatprep.subr.bf16.mxu0 0
    %421 = vmatpush1.bf16.msra.mxu0 0
    %422 = vmatprep.subr.bf16.mxu0 0
    %423 = vmatpush1.bf16.msra.mxu0 0
    %424 = vmatprep.subr.bf16.mxu0 0
    %425 = vmatpush1.bf16.msra.mxu0 0
    %426 = vmatprep.subr.bf16.mxu0 0
    %427 = vmatpush1.bf16.msra.mxu0 0
    %428 = vmatprep.subr.bf16.mxu0 0
    %429 = vmatpush1.bf16.msra.mxu0 0
    %430 = vmatprep.subr.bf16.mxu0 0
    %431 = vmatpush1.bf16.msra.mxu0 0
    %432 = vmatprep.subr.bf16.mxu0 0
    %433 = vmatpush1.bf16.msra.mxu0 0
    %434 = vmatprep.subr.bf16.mxu0 0
    %435 = vmatpush1.bf16.msra.mxu0 0
    %436 = vmatprep.subr.bf16.mxu0 0
    %437 = vmatpush1.bf16.msra.mxu0 0
    %438 = vmatprep.subr.bf16.mxu0 0
    %439 = vmatpush1.bf16.msra.mxu0 0
    %440 = vmatprep.mubr.bf16.mxu0 0
    %441 = vmatmul.mubr.bf16.gmra.mrb[0].mxu0 %v406
    %v442 = vpop.f32.mrb[0].mxu0
    %v443 = vadd.f32 0.0, %v442
    %v444 = vpop.f32.mrb[0].mxu0
    %v445 = vadd.f32 0.0, %v444
    %v446 = vpop.f32.mrb[0].mxu0
    %v447 = vpop.f32.mrb[0].mxu0
    %448 = vdwg.mxu0
    %v449 = vadd.f32 %v402, %v443
    %v450 = vxor.u32 %v449, 2147483648
    %v451 = vmul.f32 %v450, 1.442695
    %v452 = vpow.pop %v451
    %v453 = vadd.f32 %v452, 1.0
    %v454 = vrcp.pop %v453
    %v455 = vmul.f32 1.0, %v454
    %v456 = vadd.f32 %v445, %v281
    %v457 = vmul.f32 %v455, %v456
    %v458 = vadd.f32 %v403, %v457
    %v459 = vtanh.pop %v458
    %v460 = vsub.f32 %v393, %v459
    %462 = vrot.lane.b32.xlu0 %v460, 64
    %v463 = vpop.permute.xlu0 %462
    %v465 = vmul.f32 %v455, %v463
    %467 = vrot.lane.b32.xlu0 %v465, 64
    %v468 = vpop.permute.xlu0 %467
    %v470 = vadd.f32 %v459, %v468
    %s471 = scalar_lea.vmem [#allocation3], 8
    %472 = vst.msk [vmem:[%s471] sm:$0xff] %vm394, %v470
    %s473 = scalar_lea.vmem [#allocation3], 48
    %474 = vst.msk [vmem:[%s473] sm:$0xff] %vm397, %v470
    %s475 = smul.u32 2, 2
    %s476 = smul.addr %s475, 8
    %s477 = scalar_lea.vmem [#allocation2], %s476
    %v478 = vld [vmem:[%s477] sm:$0xff]
    %v479 = vld [vmem:[%s477 + $0x8] sm:$0xff]
    %v480 = vpack.c.bf16 %v470, %v470
    %v482 = vsel %vm252, %v480, 0
    %484 = vmatprep.subr.bf16.mxu0 %v313
    %485 = vmatpush1.bf16.msra.mxu0 %v312
    %486 = vmatprep.subr.bf16.mxu0 %v315
    %487 = vmatpush1.bf16.msra.mxu0 %v314
    %488 = vmatprep.subr.bf16.mxu0 %v317
    %489 = vmatpush1.bf16.msra.mxu0 %v316
    %490 = vmatprep.subr.bf16.mxu0 %v319
    %491 = vmatpush1.bf16.msra.mxu0 %v318
    %492 = vmatprep.subr.bf16.mxu0 0
    %493 = vmatpush1.bf16.msra.mxu0 0
    %494 = vmatprep.subr.bf16.mxu0 0
    %495 = vmatpush1.bf16.msra.mxu0 0
    %496 = vmatprep.subr.bf16.mxu0 0
    %497 = vmatpush1.bf16.msra.mxu0 0
    %498 = vmatprep.subr.bf16.mxu0 0
    %499 = vmatpush1.bf16.msra.mxu0 0
    %500 = vmatprep.subr.bf16.mxu0 0
    %501 = vmatpush1.bf16.msra.mxu0 0
    %502 = vmatprep.subr.bf16.mxu0 0
    %503 = vmatpush1.bf16.msra.mxu0 0
    %504 = vmatprep.subr.bf16.mxu0 0
    %505 = vmatpush1.bf16.msra.mxu0 0
    %506 = vmatprep.subr.bf16.mxu0 0
    %507 = vmatpush1.bf16.msra.mxu0 0
    %508 = vmatprep.subr.bf16.mxu0 0
    %509 = vmatpush1.bf16.msra.mxu0 0
    %510 = vmatprep.subr.bf16.mxu0 0
    %511 = vmatpush1.bf16.msra.mxu0 0
    %512 = vmatprep.subr.bf16.mxu0 0
    %513 = vmatpush1.bf16.msra.mxu0 0
    %514 = vmatprep.subr.bf16.mxu0 0
    %515 = vmatpush1.bf16.msra.mxu0 0
    %516 = vmatprep.mubr.bf16.mxu0 0
    %517 = vmatmul.mubr.bf16.gmra.mrb[0].mxu0 %v482
    %v518 = vpop.f32.mrb[0].mxu0
    %v519 = vadd.f32 0.0, %v518
    %v520 = vpop.f32.mrb[0].mxu0
    %v521 = vadd.f32 0.0, %v520
    %v522 = vpop.f32.mrb[0].mxu0
    %v523 = vpop.f32.mrb[0].mxu0
    %524 = vdwg.mxu0
    %v525 = vadd.f32 %v478, %v519
    %v526 = vxor.u32 %v525, 2147483648
    %v527 = vmul.f32 %v526, 1.442695
    %v528 = vpow.pop %v527
    %v529 = vadd.f32 %v528, 1.0
    %v530 = vrcp.pop %v529
    %v531 = vmul.f32 1.0, %v530
    %v532 = vadd.f32 %v521, %v281
    %v533 = vmul.f32 %v531, %v532
    %v534 = vadd.f32 %v479, %v533
    %v535 = vtanh.pop %v534
    %v536 = vsub.f32 %v470, %v535
    %538 = vrot.lane.b32.xlu0 %v536, 64
    %v539 = vpop.permute.xlu0 %538
    %v541 = vmul.f32 %v531, %v539
    %543 = vrot.lane.b32.xlu0 %v541, 64
    %v544 = vpop.permute.xlu0 %543
    %v546 = vadd.f32 %v535, %v544
    %s547 = scalar_lea.vmem [#allocation3], 16
    %548 = vst.msk [vmem:[%s547] sm:$0xff] %vm394, %v546
    %s549 = scalar_lea.vmem [#allocation3], 40
    %550 = vst.msk [vmem:[%s549] sm:$0xff] %vm397, %v546
    %s551 = smul.u32 3, 2
    %s552 = smul.addr %s551, 8
    %s553 = scalar_lea.vmem [#allocation2], %s552
    %v554 = vld [vmem:[%s553] sm:$0xff]
    %v555 = vld [vmem:[%s553 + $0x8] sm:$0xff]
    %v556 = vpack.c.bf16 %v546, %v546
    %v558 = vsel %vm252, %v556, 0
    %560 = vmatprep.subr.bf16.mxu0 %v313
    %561 = vmatpush1.bf16.msra.mxu0 %v312
    %562 = vmatprep.subr.bf16.mxu0 %v315
    %563 = vmatpush1.bf16.msra.mxu0 %v314
    %564 = vmatprep.subr.bf16.mxu0 %v317
    %565 = vmatpush1.bf16.msra.mxu0 %v316
    %566 = vmatprep.subr.bf16.mxu0 %v319
    %567 = vmatpush1.bf16.msra.mxu0 %v318
    %568 = vmatprep.subr.bf16.mxu0 0
    %569 = vmatpush1.bf16.msra.mxu0 0
    %570 = vmatprep.subr.bf16.mxu0 0
    %571 = vmatpush1.bf16.msra.mxu0 0
    %572 = vmatprep.subr.bf16.mxu0 0
    %573 = vmatpush1.bf16.msra.mxu0 0
    %574 = vmatprep.subr.bf16.mxu0 0
    %575 = vmatpush1.bf16.msra.mxu0 0
    %576 = vmatprep.subr.bf16.mxu0 0
    %577 = vmatpush1.bf16.msra.mxu0 0
    %578 = vmatprep.subr.bf16.mxu0 0
    %579 = vmatpush1.bf16.msra.mxu0 0
    %580 = vmatprep.subr.bf16.mxu0 0
    %581 = vmatpush1.bf16.msra.mxu0 0
    %582 = vmatprep.subr.bf16.mxu0 0
    %583 = vmatpush1.bf16.msra.mxu0 0
    %584 = vmatprep.subr.bf16.mxu0 0
    %585 = vmatpush1.bf16.msra.mxu0 0
    %586 = vmatprep.subr.bf16.mxu0 0
    %587 = vmatpush1.bf16.msra.mxu0 0
    %588 = vmatprep.subr.bf16.mxu0 0
    %589 = vmatpush1.bf16.msra.mxu0 0
    %590 = vmatprep.subr.bf16.mxu0 0
    %591 = vmatpush1.bf16.msra.mxu0 0
    %592 = vmatprep.mubr.bf16.mxu0 0
    %593 = vmatmul.mubr.bf16.gmra.mrb[0].mxu0 %v558
    %v594 = vpop.f32.mrb[0].mxu0
    %v595 = vadd.f32 0.0, %v594
    %v596 = vpop.f32.mrb[0].mxu0
    %v597 = vadd.f32 0.0, %v596
    %v598 = vpop.f32.mrb[0].mxu0
    %v599 = vpop.f32.mrb[0].mxu0
    %600 = vdwg.mxu0
    %v601 = vadd.f32 %v554, %v595
    %v602 = vxor.u32 %v601, 2147483648
    %v603 = vmul.f32 %v602, 1.442695
    %v604 = vpow.pop %v603
    %v605 = vadd.f32 %v604, 1.0
    %v606 = vrcp.pop %v605
    %v607 = vmul.f32 1.0, %v606
    %v608 = vadd.f32 %v597, %v281
    %v609 = vmul.f32 %v607, %v608
    %v610 = vadd.f32 %v555, %v609
    %v611 = vtanh.pop %v610
    %v612 = vsub.f32 %v546, %v611
    %614 = vrot.lane.b32.xlu0 %v612, 64
    %v615 = vpop.permute.xlu0 %614
    %v617 = vmul.f32 %v607, %v615
    %619 = vrot.lane.b32.xlu0 %v617, 64
    %v620 = vpop.permute.xlu0 %619
    %v622 = vadd.f32 %v611, %v620
    %s623 = scalar_lea.vmem [#allocation3], 24
    %624 = vst.msk [vmem:[%s623] sm:$0xff] %vm394, %v622
    %s625 = scalar_lea.vmem [#allocation3], 32
    %626 = vst.msk [vmem:[%s625] sm:$0xff] %vm397, %v622
    %s627 = smul.u32 4, 2
    %s628 = smul.addr %s627, 8
    %s629 = scalar_lea.vmem [#allocation2], %s628
    %v630 = vld [vmem:[%s629] sm:$0xff]
    %v631 = vld [vmem:[%s629 + $0x8] sm:$0xff]
    %v632 = vpack.c.bf16 %v622, %v622
    %v634 = vsel %vm252, %v632, 0
    %636 = vmatprep.subr.bf16.mxu0 %v313
    %637 = vmatpush1.bf16.msra.mxu0 %v312
    %638 = vmatprep.subr.bf16.mxu0 %v315
    %639 = vmatpush1.bf16.msra.mxu0 %v314
    %640 = vmatprep.subr.bf16.mxu0 %v317
    %641 = vmatpush1.bf16.msra.mxu0 %v316
    %642 = vmatprep.subr.bf16.mxu0 %v319
    %643 = vmatpush1.bf16.msra.mxu0 %v318
    %644 = vmatprep.subr.bf16.mxu0 0
    %645 = vmatpush1.bf16.msra.mxu0 0
    %646 = vmatprep.subr.bf16.mxu0 0
    %647 = vmatpush1.bf16.msra.mxu0 0
    %648 = vmatprep.subr.bf16.mxu0 0
    %649 = vmatpush1.bf16.msra.mxu0 0
    %650 = vmatprep.subr.bf16.mxu0 0
    %651 = vmatpush1.bf16.msra.mxu0 0
    %652 = vmatprep.subr.bf16.mxu0 0
    %653 = vmatpush1.bf16.msra.mxu0 0
    %654 = vmatprep.subr.bf16.mxu0 0
    %655 = vmatpush1.bf16.msra.mxu0 0
    %656 = vmatprep.subr.bf16.mxu0 0
    %657 = vmatpush1.bf16.msra.mxu0 0
    %658 = vmatprep.subr.bf16.mxu0 0
    %659 = vmatpush1.bf16.msra.mxu0 0
    %660 = vmatprep.subr.bf16.mxu0 0
    %661 = vmatpush1.bf16.msra.mxu0 0
    %662 = vmatprep.subr.bf16.mxu0 0
    %663 = vmatpush1.bf16.msra.mxu0 0
    %664 = vmatprep.subr.bf16.mxu0 0
    %665 = vmatpush1.bf16.msra.mxu0 0
    %666 = vmatprep.subr.bf16.mxu0 0
    %667 = vmatpush1.bf16.msra.mxu0 0
    %668 = vmatprep.mubr.bf16.mxu0 0
    %669 = vmatmul.mubr.bf16.gmra.mrb[0].mxu0 %v634
    %v670 = vpop.f32.mrb[0].mxu0
    %v671 = vadd.f32 0.0, %v670
    %v672 = vpop.f32.mrb[0].mxu0
    %v673 = vadd.f32 0.0, %v672
    %v674 = vpop.f32.mrb[0].mxu0
    %v675 = vpop.f32.mrb[0].mxu0
    %676 = vdwg.mxu0
    %v677 = vadd.f32 %v630, %v671
    %v678 = vxor.u32 %v677, 2147483648
    %v679 = vmul.f32 %v678, 1.442695
    %v680 = vpow.pop %v679
    %v681 = vadd.f32 %v680, 1.0
    %v682 = vrcp.pop %v681
    %v683 = vmul.f32 1.0, %v682
    %v684 = vadd.f32 %v673, %v281
    %v685 = vmul.f32 %v683, %v684
    %v686 = vadd.f32 %v631, %v685
    %v687 = vtanh.pop %v686
    %v688 = vsub.f32 %v622, %v687
    %690 = vrot.lane.b32.xlu0 %v688, 64
    %v691 = vpop.permute.xlu0 %690
    %v693 = vmul.f32 %v683, %v691
    %695 = vrot.lane.b32.xlu0 %v693, 64
    %v696 = vpop.permute.xlu0 %695
    %v698 = vadd.f32 %v687, %v696
    %699 = vst.msk [vmem:[%s625] sm:$0xff] %vm394, %v698
    %700 = vst.msk [vmem:[%s623] sm:$0xff] %vm397, %v698
    %s701 = smul.u32 5, 2
    %s702 = smul.addr %s701, 8
    %s703 = scalar_lea.vmem [#allocation2], %s702
    %v704 = vld [vmem:[%s703] sm:$0xff]
    %v705 = vld [vmem:[%s703 + $0x8] sm:$0xff]
    %v706 = vpack.c.bf16 %v698, %v698
    %v708 = vsel %vm252, %v706, 0
    %710 = vmatprep.subr.bf16.mxu0 %v313
    %711 = vmatpush1.bf16.msra.mxu0 %v312
    %712 = vmatprep.subr.bf16.mxu0 %v315
    %713 = vmatpush1.bf16.msra.mxu0 %v314
    %714 = vmatprep.subr.bf16.mxu0 %v317
    %715 = vmatpush1.bf16.msra.mxu0 %v316
    %716 = vmatprep.subr.bf16.mxu0 %v319
    %717 = vmatpush1.bf16.msra.mxu0 %v318
    %718 = vmatprep.subr.bf16.mxu0 0
    %719 = vmatpush1.bf16.msra.mxu0 0
    %720 = vmatprep.subr.bf16.mxu0 0
    %721 = vmatpush1.bf16.msra.mxu0 0
    %722 = vmatprep.subr.bf16.mxu0 0
    %723 = vmatpush1.bf16.msra.mxu0 0
    %724 = vmatprep.subr.bf16.mxu0 0
    %725 = vmatpush1.bf16.msra.mxu0 0
    %726 = vmatprep.subr.bf16.mxu0 0
    %727 = vmatpush1.bf16.msra.mxu0 0
    %728 = vmatprep.subr.bf16.mxu0 0
    %729 = vmatpush1.bf16.msra.mxu0 0
    %730 = vmatprep.subr.bf16.mxu0 0
    %731 = vmatpush1.bf16.msra.mxu0 0
    %732 = vmatprep.subr.bf16.mxu0 0
    %733 = vmatpush1.bf16.msra.mxu0 0
    %734 = vmatprep.subr.bf16.mxu0 0
    %735 = vmatpush1.bf16.msra.mxu0 0
    %736 = vmatprep.subr.bf16.mxu0 0
    %737 = vmatpush1.bf16.msra.mxu0 0
    %738 = vmatprep.subr.bf16.mxu0 0
    %739 = vmatpush1.bf16.msra.mxu0 0
    %740 = vmatprep.subr.bf16.mxu0 0
    %741 = vmatpush1.bf16.msra.mxu0 0
    %742 = vmatprep.mubr.bf16.mxu0 0
    %743 = vmatmul.mubr.bf16.gmra.mrb[0].mxu0 %v708
    %v744 = vpop.f32.mrb[0].mxu0
    %v745 = vadd.f32 0.0, %v744
    %v746 = vpop.f32.mrb[0].mxu0
    %v747 = vadd.f32 0.0, %v746
    %v748 = vpop.f32.mrb[0].mxu0
    %v749 = vpop.f32.mrb[0].mxu0
    %750 = vdwg.mxu0
    %v751 = vadd.f32 %v704, %v745
    %v752 = vxor.u32 %v751, 2147483648
    %v753 = vmul.f32 %v752, 1.442695
    %v754 = vpow.pop %v753
    %v755 = vadd.f32 %v754, 1.0
    %v756 = vrcp.pop %v755
    %v757 = vmul.f32 1.0, %v756
    %v758 = vadd.f32 %v747, %v281
    %v759 = vmul.f32 %v757, %v758
    %v760 = vadd.f32 %v705, %v759
    %v761 = vtanh.pop %v760
    %v762 = vsub.f32 %v698, %v761
    %764 = vrot.lane.b32.xlu0 %v762, 64
    %v765 = vpop.permute.xlu0 %764
    %v767 = vmul.f32 %v757, %v765
    %769 = vrot.lane.b32.xlu0 %v767, 64
    %v770 = vpop.permute.xlu0 %769
    %v772 = vadd.f32 %v761, %v770
    %773 = vst.msk [vmem:[%s549] sm:$0xff] %vm394, %v772
    %774 = vst.msk [vmem:[%s547] sm:$0xff] %vm397, %v772
    %s775 = smul.u32 6, 2
    %s776 = smul.addr %s775, 8
    %s777 = scalar_lea.vmem [#allocation2], %s776
    %v778 = vld [vmem:[%s777] sm:$0xff]
    %v779 = vld [vmem:[%s777 + $0x8] sm:$0xff]
    %v780 = vpack.c.bf16 %v772, %v772
    %v782 = vsel %vm252, %v780, 0
    %784 = vmatprep.subr.bf16.mxu0 %v313
    %785 = vmatpush1.bf16.msra.mxu0 %v312
    %786 = vmatprep.subr.bf16.mxu0 %v315
    %787 = vmatpush1.bf16.msra.mxu0 %v314
    %788 = vmatprep.subr.bf16.mxu0 %v317
    %789 = vmatpush1.bf16.msra.mxu0 %v316
    %790 = vmatprep.subr.bf16.mxu0 %v319
    %791 = vmatpush1.bf16.msra.mxu0 %v318
    %792 = vmatprep.subr.bf16.mxu0 0
    %793 = vmatpush1.bf16.msra.mxu0 0
    %794 = vmatprep.subr.bf16.mxu0 0
    %795 = vmatpush1.bf16.msra.mxu0 0
    %796 = vmatprep.subr.bf16.mxu0 0
    %797 = vmatpush1.bf16.msra.mxu0 0
    %798 = vmatprep.subr.bf16.mxu0 0
    %799 = vmatpush1.bf16.msra.mxu0 0
    %800 = vmatprep.subr.bf16.mxu0 0
    %801 = vmatpush1.bf16.msra.mxu0 0
    %802 = vmatprep.subr.bf16.mxu0 0
    %803 = vmatpush1.bf16.msra.mxu0 0
    %804 = vmatprep.subr.bf16.mxu0 0
    %805 = vmatpush1.bf16.msra.mxu0 0
    %806 = vmatprep.subr.bf16.mxu0 0
    %807 = vmatpush1.bf16.msra.mxu0 0
    %808 = vmatprep.subr.bf16.mxu0 0
    %809 = vmatpush1.bf16.msra.mxu0 0
    %810 = vmatprep.subr.bf16.mxu0 0
    %811 = vmatpush1.bf16.msra.mxu0 0
    %812 = vmatprep.subr.bf16.mxu0 0
    %813 = vmatpush1.bf16.msra.mxu0 0
    %814 = vmatprep.subr.bf16.mxu0 0
    %815 = vmatpush1.bf16.msra.mxu0 0
    %816 = vmatprep.mubr.bf16.mxu0 0
    %817 = vmatmul.mubr.bf16.gmra.mrb[0].mxu0 %v782
    %v818 = vpop.f32.mrb[0].mxu0
    %v819 = vadd.f32 0.0, %v818
    %v820 = vpop.f32.mrb[0].mxu0
    %v821 = vadd.f32 0.0, %v820
    %v822 = vpop.f32.mrb[0].mxu0
    %v823 = vpop.f32.mrb[0].mxu0
    %824 = vdwg.mxu0
    %v825 = vadd.f32 %v778, %v819
    %v826 = vxor.u32 %v825, 2147483648
    %v827 = vmul.f32 %v826, 1.442695
    %v828 = vpow.pop %v827
    %v829 = vadd.f32 %v828, 1.0
    %v830 = vrcp.pop %v829
    %v831 = vmul.f32 1.0, %v830
    %v832 = vadd.f32 %v821, %v281
    %v833 = vmul.f32 %v831, %v832
    %v834 = vadd.f32 %v779, %v833
    %v835 = vtanh.pop %v834
    %v836 = vsub.f32 %v772, %v835
    %838 = vrot.lane.b32.xlu0 %v836, 64
    %v839 = vpop.permute.xlu0 %838
    %v841 = vmul.f32 %v831, %v839
    %843 = vrot.lane.b32.xlu0 %v841, 64
    %v844 = vpop.permute.xlu0 %843
    %v846 = vadd.f32 %v835, %v844
    %847 = vst.msk [vmem:[%s473] sm:$0xff] %vm394, %v846
    %848 = vst.msk [vmem:[%s471] sm:$0xff] %vm397, %v846
    %s849 = smul.u32 7, 2
    %s850 = smul.addr %s849, 8
    %s851 = scalar_lea.vmem [#allocation2], %s850
    %v852 = vld [vmem:[%s851] sm:$0xff]
    %v853 = vld [vmem:[%s851 + $0x8] sm:$0xff]
    %v854 = vpack.c.bf16 %v846, %v846
    %v856 = vsel %vm252, %v854, 0
    %858 = vmatprep.subr.bf16.mxu0 %v313
    %859 = vmatpush1.bf16.msra.mxu0 %v312
    %860 = vmatprep.subr.bf16.mxu0 %v315
    %861 = vmatpush1.bf16.msra.mxu0 %v314
    %862 = vmatprep.subr.bf16.mxu0 %v317
    %863 = vmatpush1.bf16.msra.mxu0 %v316
    %864 = vmatprep.subr.bf16.mxu0 %v319
    %865 = vmatpush1.bf16.msra.mxu0 %v318
    %866 = vmatprep.subr.bf16.mxu0 0
    %867 = vmatpush1.bf16.msra.mxu0 0
    %868 = vmatprep.subr.bf16.mxu0 0
    %869 = vmatpush1.bf16.msra.mxu0 0
    %870 = vmatprep.subr.bf16.mxu0 0
    %871 = vmatpush1.bf16.msra.mxu0 0
    %872 = vmatprep.subr.bf16.mxu0 0
    %873 = vmatpush1.bf16.msra.mxu0 0
    %874 = vmatprep.subr.bf16.mxu0 0
    %875 = vmatpush1.bf16.msra.mxu0 0
    %876 = vmatprep.subr.bf16.mxu0 0
    %877 = vmatpush1.bf16.msra.mxu0 0
    %878 = vmatprep.subr.bf16.mxu0 0
    %879 = vmatpush1.bf16.msra.mxu0 0
    %880 = vmatprep.subr.bf16.mxu0 0
    %881 = vmatpush1.bf16.msra.mxu0 0
    %882 = vmatprep.subr.bf16.mxu0 0
    %883 = vmatpush1.bf16.msra.mxu0 0
    %884 = vmatprep.subr.bf16.mxu0 0
    %885 = vmatpush1.bf16.msra.mxu0 0
    %886 = vmatprep.subr.bf16.mxu0 0
    %887 = vmatpush1.bf16.msra.mxu0 0
    %888 = vmatprep.subr.bf16.mxu0 0
    %889 = vmatpush1.bf16.msra.mxu0 0
    %890 = vmatprep.mubr.bf16.mxu0 0
    %891 = vmatmul.mubr.bf16.gmra.mrb[0].mxu0 %v856
    %v892 = vpop.f32.mrb[0].mxu0
    %v893 = vadd.f32 0.0, %v892
    %v894 = vpop.f32.mrb[0].mxu0
    %v895 = vadd.f32 0.0, %v894
    %v896 = vpop.f32.mrb[0].mxu0
    %v897 = vpop.f32.mrb[0].mxu0
    %898 = vdwg.mxu0
    %v899 = vadd.f32 %v852, %v893
    %v900 = vxor.u32 %v899, 2147483648
    %v901 = vmul.f32 %v900, 1.442695
    %v902 = vpow.pop %v901
    %v903 = vadd.f32 %v902, 1.0
    %v904 = vrcp.pop %v903
    %v905 = vmul.f32 1.0, %v904
    %v906 = vadd.f32 %v895, %v281
    %v907 = vmul.f32 %v905, %v906
    %v908 = vadd.f32 %v853, %v907
    %v909 = vtanh.pop %v908
    %v910 = vsub.f32 %v846, %v909
    %912 = vrot.lane.b32.xlu0 %v910, 64
    %v913 = vpop.permute.xlu0 %912
    %v915 = vmul.f32 %v905, %v913
    %917 = vrot.lane.b32.xlu0 %v915, 64
    %v918 = vpop.permute.xlu0 %917
    %v920 = vadd.f32 %v909, %v918
    %921 = vst.msk [vmem:[%s396] sm:$0xff] %vm394, %v920
    %922 = vst.msk [vmem:[#allocation3] sm:$0xff] %vm397, %v920
    %v923 = vld [vmem:[#allocation3] sm:$0xff]
    %v924 = vld [vmem:[#allocation3 + $0x8] sm:$0xff]
    %v925 = vld [vmem:[#allocation3 + $0x10] sm:$0xff]
    %v926 = vld [vmem:[#allocation3 + $0x18] sm:$0xff]
    %v927 = vld [vmem:[#allocation3 + $0x20] sm:$0xff]
    %v928 = vld [vmem:[#allocation3 + $0x28] sm:$0xff]
    %v929 = vld [vmem:[#allocation3 + $0x30] sm:$0xff]
    %v930 = vld [vmem:[#allocation3 + $0x38] sm:$0xff]
    %v931 = vpack.c.bf16 %v924, %v923
    %v932 = vpack.c.bf16 %v926, %v925
    %v933 = vpack.c.bf16 %v928, %v927
    %v934 = vpack.c.bf16 %v930, %v929
    %v935 = vld [vmem:[%s5] sm:$0xf]
    %v936 = vld [vmem:[%s5 + $0x4] sm:$0xf]
    %v937 = vld [vmem:[%s5 + $0x8] sm:$0xf]
    %v938 = vld [vmem:[%s5 + $0xc] sm:$0xf]
    %v939 = vld [vmem:[%s5 + $0x10] sm:$0xf]
    %v940 = vld [vmem:[%s5 + $0x14] sm:$0xf]
    %v941 = vld [vmem:[%s5 + $0x18] sm:$0xf]
    %v942 = vld [vmem:[%s5 + $0x1c] sm:$0xf]
    %v943 = vld [vmem:[%s6] sm:$0x1]
    %v945 = vlaneseq
    %v946 = vshrl.u32 %v945, 7
    %v947 = vsub.s32 0, %v946
    %v948 = vrot.slane %v943, %v947
    %v958 = vunpack.c.l.b16 %v935
    %v959 = vunpack.c.l.b16 %v936
    %v960 = vunpack.c.l.b16 %v937
    %v961 = vunpack.c.l.b16 %v938
    %v962 = vunpack.c.l.b16 %v939
    %v963 = vunpack.c.l.b16 %v940
    %v964 = vunpack.c.l.b16 %v941
    %v965 = vunpack.c.l.b16 %v942
    %v966 = vpack.c.b16 %v959, %v958
    %v967 = vpack.c.b16 %v961, %v960
    %v968 = vpack.c.b16 %v963, %v962
    %v969 = vpack.c.b16 %v965, %v964
    %v975 = vsel %vm252, %v931, 0
    %v978 = vsel %vm252, %v932, 0
    %v981 = vsel %vm252, %v933, 0
    %v984 = vsel %vm252, %v934, 0
    %986 = vmatprep.subr.bf16.mxu0 0
    %987 = vmatpush1.bf16.msra.mxu0 %v966
    %988 = vmatprep.subr.bf16.mxu0 0
    %989 = vmatpush1.bf16.msra.mxu0 %v967
    %990 = vmatprep.subr.bf16.mxu0 0
    %991 = vmatpush1.bf16.msra.mxu0 %v968
    %992 = vmatprep.subr.bf16.mxu0 0
    %993 = vmatpush1.bf16.msra.mxu0 %v969
    %994 = vmatprep.subr.bf16.mxu0 0
    %995 = vmatpush1.bf16.msra.mxu0 0
    %996 = vmatprep.subr.bf16.mxu0 0
    %997 = vmatpush1.bf16.msra.mxu0 0
    %998 = vmatprep.subr.bf16.mxu0 0
    %999 = vmatpush1.bf16.msra.mxu0 0
    %1000 = vmatprep.subr.bf16.mxu0 0
    %1001 = vmatpush1.bf16.msra.mxu0 0
    %1002 = vmatprep.subr.bf16.mxu0 0
    %1003 = vmatpush1.bf16.msra.mxu0 0
    %1004 = vmatprep.subr.bf16.mxu0 0
    %1005 = vmatpush1.bf16.msra.mxu0 0
    %1006 = vmatprep.subr.bf16.mxu0 0
    %1007 = vmatpush1.bf16.msra.mxu0 0
    %1008 = vmatprep.subr.bf16.mxu0 0
    %1009 = vmatpush1.bf16.msra.mxu0 0
    %1010 = vmatprep.subr.bf16.mxu0 0
    %1011 = vmatpush1.bf16.msra.mxu0 0
    %1012 = vmatprep.subr.bf16.mxu0 0
    %1013 = vmatpush1.bf16.msra.mxu0 0
    %1014 = vmatprep.subr.bf16.mxu0 0
    %1015 = vmatpush1.bf16.msra.mxu0 0
    %1016 = vmatprep.subr.bf16.mxu0 0
    %1017 = vmatpush1.bf16.msra.mxu0 0
    %1018 = vmatprep.mubr.bf16.mxu0 0
    %1019 = vmatmul.mubr.bf16.gmra.mrb[0].mxu0 %v975
    %v1020 = vpop.f32.mrb[0].mxu0
    %v1021 = vadd.f32 %v948, %v1020
    %v1022 = vpop.f32.mrb[0].mxu0
    %v1023 = vpop.f32.mrb[0].mxu0
    %v1024 = vadd.f32 %v948, %v1023
    %v1025 = vpop.f32.mrb[0].mxu0
    %1026 = vmatprep.mubr.bf16.mxu0 0
    %1027 = vmatmul.mubr.bf16.gmra.mrb[0].mxu0 %v978
    %v1028 = vpop.f32.mrb[0].mxu0
    %v1029 = vadd.f32 %v948, %v1028
    %v1030 = vpop.f32.mrb[0].mxu0
    %v1031 = vpop.f32.mrb[0].mxu0
    %v1032 = vadd.f32 %v948, %v1031
    %v1033 = vpop.f32.mrb[0].mxu0
    %1034 = vmatprep.mubr.bf16.mxu0 0
    %1035 = vmatmul.mubr.bf16.gmra.mrb[0].mxu0 %v981
    %v1036 = vpop.f32.mrb[0].mxu0
    %v1037 = vadd.f32 %v948, %v1036
    %v1038 = vpop.f32.mrb[0].mxu0
    %v1039 = vpop.f32.mrb[0].mxu0
    %v1040 = vadd.f32 %v948, %v1039
    %v1041 = vpop.f32.mrb[0].mxu0
    %1042 = vmatprep.mubr.bf16.mxu0 0
    %1043 = vmatmul.mubr.bf16.gmra.mrb[0].mxu0 %v984
    %v1044 = vpop.f32.mrb[0].mxu0
    %v1045 = vadd.f32 %v948, %v1044
    %v1046 = vpop.f32.mrb[0].mxu0
    %v1047 = vpop.f32.mrb[0].mxu0
    %v1048 = vadd.f32 %v948, %v1047
    %v1049 = vpop.f32.mrb[0].mxu0
    %1050 = vdwg.mxu0
    %v1051 = vmax.f32 %v1021, 0.0
    %v1052 = vmax.f32 %v1024, 0.0
    %v1053 = vmax.f32 %v1029, 0.0
    %v1054 = vmax.f32 %v1032, 0.0
    %v1055 = vmax.f32 %v1037, 0.0
    %v1056 = vmax.f32 %v1040, 0.0
    %v1057 = vmax.f32 %v1045, 0.0
    %v1058 = vmax.f32 %v1048, 0.0
    %v1059 = vmax.f32 %v1051, %v1052
    %v1060 = vmax.f32 %v1059, %v1053
    %v1061 = vmax.f32 %v1060, %v1054
    %v1062 = vmax.f32 %v1061, %v1055
    %v1063 = vmax.f32 %v1062, %v1056
    %v1064 = vmax.f32 %v1063, %v1057
    %v1065 = vmax.f32 %v1064, %v1058
    %1067 = vrot.lane.b32.xlu0 %v1065, 64
    %v1068 = vpop.permute.xlu0 %1067
    %v1070 = vsel %vm252, %v920, %v1068
    %v1071 = vpack.c.bf16 %v1070, %v1070
    %v1072 = vld [vmem:[%s7] sm:$0xf]
    %v1073 = vld [vmem:[%s7 + $0x4] sm:$0xf]
    %v1074 = vld [vmem:[%s7 + $0x8] sm:$0xf]
    %v1075 = vld [vmem:[%s7 + $0xc] sm:$0xf]
    %v1076 = vld [vmem:[%s7 + $0x10] sm:$0xf]
    %v1077 = vld [vmem:[%s7 + $0x14] sm:$0xf]
    %v1078 = vld [vmem:[%s7 + $0x18] sm:$0xf]
    %v1079 = vld [vmem:[%s7 + $0x1c] sm:$0xf]
    %v1080 = vld [vmem:[%s7 + $0x20] sm:$0xf]
    %v1081 = vld [vmem:[%s7 + $0x24] sm:$0xf]
    %v1082 = vld [vmem:[%s8] sm:$0x1]
    %v1084 = vlaneseq
    %v1085 = vshrl.u32 %v1084, 7
    %v1086 = vsub.s32 0, %v1085
    %v1087 = vrot.slane %v1082, %v1086
    %v1099 = vunpack.c.l.b16 %v1072
    %v1100 = vunpack.c.l.b16 %v1073
    %v1101 = vunpack.c.l.b16 %v1074
    %v1102 = vunpack.c.l.b16 %v1075
    %v1103 = vunpack.c.l.b16 %v1076
    %v1104 = vunpack.c.l.b16 %v1077
    %v1105 = vunpack.c.l.b16 %v1078
    %v1106 = vunpack.c.l.b16 %v1079
    %v1107 = vunpack.c.l.b16 %v1080
    %v1108 = vunpack.c.l.b16 %v1081
    %v1109 = vpack.c.b16 %v1100, %v1099
    %v1110 = vpack.c.b16 %v1102, %v1101
    %v1111 = vpack.c.b16 %v1104, %v1103
    %v1112 = vpack.c.b16 %v1106, %v1105
    %v1113 = vpack.c.b16 %v1108, %v1107
    %v1120 = vsel %vm165, %v1071, 0
    %1122 = vmatprep.subr.bf16.mxu0 0
    %1123 = vmatpush1.bf16.msra.mxu0 %v1109
    %1124 = vmatprep.subr.bf16.mxu0 0
    %1125 = vmatpush1.bf16.msra.mxu0 %v1110
    %1126 = vmatprep.subr.bf16.mxu0 0
    %1127 = vmatpush1.bf16.msra.mxu0 %v1111
    %1128 = vmatprep.subr.bf16.mxu0 0
    %1129 = vmatpush1.bf16.msra.mxu0 %v1112
    %1130 = vmatprep.subr.bf16.mxu0 0
    %1131 = vmatpush1.bf16.msra.mxu0 %v1113
    %1132 = vmatprep.subr.bf16.mxu0 0
    %1133 = vmatpush1.bf16.msra.mxu0 0
    %1134 = vmatprep.subr.bf16.mxu0 0
    %1135 = vmatpush1.bf16.msra.mxu0 0
    %1136 = vmatprep.subr.bf16.mxu0 0
    %1137 = vmatpush1.bf16.msra.mxu0 0
    %1138 = vmatprep.subr.bf16.mxu0 0
    %1139 = vmatpush1.bf16.msra.mxu0 0
    %1140 = vmatprep.subr.bf16.mxu0 0
    %1141 = vmatpush1.bf16.msra.mxu0 0
    %1142 = vmatprep.subr.bf16.mxu0 0
    %1143 = vmatpush1.bf16.msra.mxu0 0
    %1144 = vmatprep.subr.bf16.mxu0 0
    %1145 = vmatpush1.bf16.msra.mxu0 0
    %1146 = vmatprep.subr.bf16.mxu0 0
    %1147 = vmatpush1.bf16.msra.mxu0 0
    %1148 = vmatprep.subr.bf16.mxu0 0
    %1149 = vmatpush1.bf16.msra.mxu0 0
    %1150 = vmatprep.subr.bf16.mxu0 0
    %1151 = vmatpush1.bf16.msra.mxu0 0
    %1152 = vmatprep.subr.bf16.mxu0 0
    %1153 = vmatpush1.bf16.msra.mxu0 0
    %1154 = vmatprep.mubr.bf16.mxu0 0
    %1155 = vmatmul.mubr.bf16.gmra.mrb[0].mxu0 %v1120
    %v1156 = vpop.f32.mrb[0].mxu0
    %v1157 = vadd.f32 %v1087, %v1156
    %v1158 = vpop.f32.mrb[0].mxu0
    %v1159 = vpop.f32.mrb[0].mxu0
    %v1160 = vpop.f32.mrb[0].mxu0
    %1161 = vdwg.mxu0
    %v1162 = vmax.f32 %v1157, 0.0
    %v1163 = vpack.c.bf16 %v1162, %v1162
    %v1164 = vld [vmem:[%s9] sm:$0xf]
    %v1165 = vld [vmem:[%s9 + $0x4] sm:$0xf]
    %v1166 = vld [vmem:[%s9 + $0x8] sm:$0xf]
    %v1167 = vld [vmem:[%s9 + $0xc] sm:$0xf]
    %v1168 = vld [vmem:[%s10] sm:$0x1]
    %v1170 = vlaneseq
    %v1171 = vshrl.u32 %v1170, 7
    %v1172 = vsub.s32 0, %v1171
    %v1173 = vrot.slane %v1168, %v1172
    %v1179 = vunpack.c.l.b16 %v1164
    %v1180 = vunpack.c.l.b16 %v1165
    %v1181 = vunpack.c.l.b16 %v1166
    %v1182 = vunpack.c.l.b16 %v1167
    %v1183 = vpack.c.b16 %v1180, %v1179
    %v1184 = vpack.c.b16 %v1182, %v1181
    %v1188 = vsel %vm394, %v1163, 0
    %1190 = vmatprep.subr.bf16.mxu0 0
    %1191 = vmatpush1.bf16.msra.mxu0 %v1183
    %1192 = vmatprep.subr.bf16.mxu0 0
    %1193 = vmatpush1.bf16.msra.mxu0 %v1184
    %1194 = vmatprep.subr.bf16.mxu0 0
    %1195 = vmatpush1.bf16.msra.mxu0 0
    %1196 = vmatprep.subr.bf16.mxu0 0
    %1197 = vmatpush1.bf16.msra.mxu0 0
    %1198 = vmatprep.subr.bf16.mxu0 0
    %1199 = vmatpush1.bf16.msra.mxu0 0
    %1200 = vmatprep.subr.bf16.mxu0 0
    %1201 = vmatpush1.bf16.msra.mxu0 0
    %1202 = vmatprep.subr.bf16.mxu0 0
    %1203 = vmatpush1.bf16.msra.mxu0 0
    %1204 = vmatprep.subr.bf16.mxu0 0
    %1205 = vmatpush1.bf16.msra.mxu0 0
    %1206 = vmatprep.subr.bf16.mxu0 0
    %1207 = vmatpush1.bf16.msra.mxu0 0
    %1208 = vmatprep.subr.bf16.mxu0 0
    %1209 = vmatpush1.bf16.msra.mxu0 0
    %1210 = vmatprep.subr.bf16.mxu0 0
    %1211 = vmatpush1.bf16.msra.mxu0 0
    %1212 = vmatprep.subr.bf16.mxu0 0
    %1213 = vmatpush1.bf16.msra.mxu0 0
    %1214 = vmatprep.subr.bf16.mxu0 0
    %1215 = vmatpush1.bf16.msra.mxu0 0
    %1216 = vmatprep.subr.bf16.mxu0 0
    %1217 = vmatpush1.bf16.msra.mxu0 0
    %1218 = vmatprep.subr.bf16.mxu0 0
    %1219 = vmatpush1.bf16.msra.mxu0 0
    %1220 = vmatprep.subr.bf16.mxu0 0
    %1221 = vmatpush1.bf16.msra.mxu0 0
    %1222 = vmatprep.mubr.bf16.mxu0 0
    %1223 = vmatmul.mubr.bf16.gmra.mrb[0].mxu0 %v1188
    %v1224 = vpop.f32.mrb[0].mxu0
    %v1225 = vadd.f32 %v1173, %v1224
    %v1226 = vpop.f32.mrb[0].mxu0
    %v1227 = vpop.f32.mrb[0].mxu0
    %v1228 = vpop.f32.mrb[0].mxu0
    %1229 = vdwg.mxu0
    %vm1230 = vcmask 31744
    %1231 = vst.msk [vmem:[%s11] sm:$0xff] %vm1230, %v1225
    // Predicated region
    $region54: #{tpu_custom_call.1} parent=1 // pred_check
      _
    $region55: #{tpu_custom_call.1} parent=1 // pred_check_branch
      %1233 = sbr.rel (0) target = $region57
    $region56: #{tpu_custom_call.1} parent=1 // pred_region
      _
    $region57: #{tpu_custom_call.1} parent=1 // pred_fallthru
      _
    // Predicated region
    $region58: #{tpu_custom_call.1} parent=1 // pred_check
      _
    $region59: #{tpu_custom_call.1} parent=1 // pred_check_branch
      %1235 = sbr.rel (0) target = $region61
    $region60: #{tpu_custom_call.1} parent=1 // pred_region
      _
    $region61: #{tpu_custom_call.1} parent=1 // pred_fallthru
      _
    %1236 = vsyncpa [#allocation5], 1
    %1237 = vsyncpa [#allocation7], 1

</llo_original>
